<compile_context>
chip_gen: v7x
topology: tpu7x:2x2x1
jax: 0.10.0
libtpu: 0.0.40
codegen_flags: <defaults>
</compile_context>

<pallas_src>
import functools

import jax
import jax.numpy as jnp
from jax import lax
from jax.experimental import pallas as pl
from jax.experimental.pallas import tpu as pltpu

LANES = 128  # TPU vreg lane width; one lane block = 128 packed (batch, channel) planes.


def _dwconv_kernel(w_ref, b_ref, x_ref, o_ref, xp_ref, *,
                   K, H, W, Ho, Wo, stride, pad, woff, rs_max):
    """One program = one 128-lane block of packed (batch, channel) planes.

    w_ref : (K*K, 128)   VMEM  per-tap, per-lane weights
    b_ref : (1, 128)     VMEM  per-lane bias
    x_ref : (H, W, 128)        unpadded input planes, lanes dense
    o_ref : (Ho, Wo, 128)      output planes
    xp_ref: (H+2p, woff+W+p, 128) VMEM scratch holding the reflect-padded plane;
            the image interior starts at W-offset `woff` (multiple of 8) so the
            bulk interior copy is sublane-aligned (unmasked vst).
    """
    # ---- 1. fused reflect halo into the aligned VMEM scratch ---------------
    # Interior (aligned W offset -> dense stores, no masked vst.msk prologue).
    xp_ref[pad:pad + H, woff:woff + W, :] = x_ref[...]
    for j in range(pad):
        # Rows (edge-exclusive reflect, matches PyTorch 'reflect'), interior cols.
        xp_ref[j:j + 1, woff:woff + W, :] = x_ref[pad - j:pad - j + 1, :, :]
        xp_ref[pad + H + j:pad + H + j + 1, woff:woff + W, :] = \
            x_ref[H - 2 - j:H - 1 - j, :, :]
    for j in range(pad):
        # Columns: copy already-filled columns across ALL rows (fills corners).
        # These reads depend on the row stores above -- keep the ordering.
        xp_ref[:, woff - pad + j:woff - pad + j + 1, :] = \
            xp_ref[:, woff + pad - j:woff + pad - j + 1, :]
        xp_ref[:, woff + W + j:woff + W + j + 1, :] = \
            xp_ref[:, woff + W - 2 - j:woff + W - 1 - j, :]

    b32 = b_ref[...].astype(jnp.float32).reshape(1, 1, LANES)
    w_span = (Wo - 1) * stride + 1

    # ---- 2. strip-wise accumulation (acc stays within ~16 vregs) -----------
    for r0 in range(0, Ho, rs_max):
        rs = min(rs_max, Ho - r0)
        h_span = (rs - 1) * stride + 1
        # Bias folded into the accumulator init (no extra output pass).
        acc = jnp.broadcast_to(b32, (rs, Wo, LANES))
        for kh in range(K):
            h_lo = r0 * stride + kh
            for kw in range(K):
                w_lo = woff - pad + kw
                # Tap patch read directly from the ref (no full-plane value).
                patch = xp_ref[h_lo:h_lo + h_span, w_lo:w_lo + w_span, :]
                if stride > 1:
                    # TODO(synk): polyphase decomposition to avoid strided
                    # sublane decimation when stride > 1.
                    patch = patch[::stride, ::stride, :]
                # Per-tap weight row read from VMEM, lane vector broadcast.
                w_tap = w_ref[kh * K + kw:kh * K + kw + 1, :] \
                    .astype(jnp.float32).reshape(1, 1, LANES)
                acc = acc + patch.astype(jnp.float32) * w_tap
        o_ref[r0:r0 + rs, :, :] = acc.astype(o_ref.dtype)


def depthwise_conv2d(x, weights, bias, *, kernel_size, stride):
    """Depthwise conv2d with reflect padding (PyTorch 'reflect'), NCHW in/out.

    x: (N, C, H, W); weights: (C, K, K); bias: (C,).
    """
    N, C, H, W = x.shape
    K = kernel_size
    pad = K // 2
    assert pad < H and pad < W, "reflect padding requires H, W > kernel_size // 2"

    Ho = (H + 2 * pad - K) // stride + 1
    Wo = (W + 2 * pad - K) // stride + 1

    NC = N * C
    Cp = ((NC + LANES - 1) // LANES) * LANES  # packed lane axis, padded to 128

    # Layout plumbing (single XLA pass): pack (N, C) jointly onto the lane axis
    # so small channel counts still fill lanes. Lane index = n*C + c.
    x_cl = jnp.pad(jnp.transpose(x, (2, 3, 0, 1)).reshape(H, W, NC),
                   ((0, 0), (0, 0), (0, Cp - NC)))
    # Per-lane tap weights: lane n*C + c uses weights[c]; shape (K*K, Cp).
    w_cl = jnp.pad(jnp.tile(weights.reshape(C, K * K), (N, 1)).T,
                   ((0, 0), (0, Cp - NC)))
    b_cl = jnp.pad(jnp.tile(bias, N), (0, Cp - NC)).reshape(1, Cp)

    # Interior W offset in the padded scratch, rounded up to a sublane multiple
    # so the bulk interior copy is aligned.
    woff = ((pad + 7) // 8) * 8 if pad > 0 else 0
    # Output-row strip height: keep the f32 strip accumulator within ~16 vregs.
    wo_vregs = -(-Wo // 8)
    rs_max = max(1, min(8, 16 // max(wo_vregs, 1), Ho))

    kernel = functools.partial(_dwconv_kernel, K=K, H=H, W=W, Ho=Ho, Wo=Wo,
                               stride=stride, pad=pad, woff=woff, rs_max=rs_max)

    out_cl = pl.pallas_call(
        kernel,
        out_shape=jax.ShapeDtypeStruct((Ho, Wo, Cp), x.dtype),
        grid_spec=pltpu.PrefetchScalarGridSpec(
            num_scalar_prefetch=0,
            grid=(Cp // LANES,),
            in_specs=[
                pl.BlockSpec((K * K, LANES), lambda cb: (0, cb)),     # weights
                pl.BlockSpec((1, LANES), lambda cb: (0, cb)),         # bias
                pl.BlockSpec((H, W, LANES), lambda cb: (0, 0, cb)),   # input
            ],
            out_specs=pl.BlockSpec((Ho, Wo, LANES), lambda cb: (0, 0, cb)),
            scratch_shapes=[
                pltpu.VMEM((H + 2 * pad, woff + W + pad, LANES), x.dtype)],
        ),
        # Lane blocks write independent outputs. With >=2 blocks this axis could
        # be pltpu.CORE_PARALLEL for explicit v7x two-TC sharding.
        compiler_params=pltpu.CompilerParams(
            dimension_semantics=("parallel",)),
    )(w_cl, b_cl, x_cl)

    # Strip lane padding, unpack (n, c), return to NCHW.
    out = out_cl[..., :NC].reshape(Ho, Wo, N, C)
    return jnp.transpose(out, (2, 3, 0, 1))


def _reference(x, weights, bias, *, kernel_size, stride):
    """Pure-JAX reference: reflect-pad + grouped (depthwise) conv."""
    C = x.shape[1]
    pad = kernel_size // 2
    x_pad = jnp.pad(x, ((0, 0), (0, 0), (pad, pad), (pad, pad)), mode="reflect")
    w = weights[:, None, :, :]  # (C, 1, K, K) -> OIHW with groups=C
    out = lax.conv_general_dilated(
        x_pad, w, window_strides=(stride, stride), padding="VALID",
        dimension_numbers=("NCHW", "OIHW", "NCHW"), feature_group_count=C)
    return out + bias[None, :, None, None]


if __name__ == "__main__":
    N, C, H, W = 2, 4, 16, 16
    kernel_size, stride = 3, 1

    key = jax.random.PRNGKey(0)
    kx, kw, kb = jax.random.split(key, 3)
    x = jax.random.normal(kx, (N, C, H, W), dtype=jnp.float32)
    # Per-channel Conv2d(1,1,K,K) weights -> (C, K, K), biases -> (C,)
    weights = jax.random.normal(kw, (C, kernel_size, kernel_size), dtype=jnp.float32) * 0.1
    bias = jax.random.normal(kb, (C,), dtype=jnp.float32) * 0.1

    out = depthwise_conv2d(x, weights, bias, kernel_size=kernel_size, stride=stride)
    out = jax.block_until_ready(out)

    ref = _reference(x, weights, bias, kernel_size=kernel_size, stride=stride)
    assert out.shape == ref.shape, (out.shape, ref.shape)
    assert jnp.allclose(out, ref, atol=1e-5, rtol=1e-5), float(jnp.max(jnp.abs(out - ref)))

    print("KERNEL_OK")
</pallas_src>

<mosaic_0001>
module attributes {stable_mosaic.version = 11 : i64} {
  func.func @_dwconv_kernel(%arg0: i32, %arg1: memref<9x128xf32, #tpu.memory_space<vmem>>, %arg2: memref<1x128xf32, #tpu.memory_space<vmem>>, %arg3: memref<16x16x128xf32, #tpu.memory_space<vmem>>, %arg4: memref<16x16x128xf32, #tpu.memory_space<vmem>>, %arg5: memref<18x25x128xf32, #tpu.memory_space<vmem>>) attributes {dimension_semantics = [#tpu.dimension_semantics<parallel>], iteration_bounds = array<i64: 1>, scalar_prefetch = 0 : i64, scratch_operands = 1 : i64, tpu.core_type = #tpu.core_type<tc>, window_params = [{transform_indices = @transform_0, window_bounds = array<i64: 9, 128>}, {transform_indices = @transform_1, window_bounds = array<i64: 1, 128>}, {transform_indices = @transform_2, window_bounds = array<i64: 16, 16, 128>}, {transform_indices = @transform_3, window_bounds = array<i64: 16, 16, 128>}]} {
    %c0 = arith.constant 0 : index
    %c0_0 = arith.constant 0 : index
    %c0_1 = arith.constant 0 : index
    %0 = vector.load %arg3[%c0, %c0_0, %c0_1] : memref<16x16x128xf32, #tpu.memory_space<vmem>>, vector<16x16x128xf32>
    %c1 = arith.constant 1 : index
    %c8 = arith.constant 8 : index
    %c0_2 = arith.constant 0 : index
    %1 = vector.load %arg5[%c1, %c8, %c0_2] : memref<18x25x128xf32, #tpu.memory_space<vmem>>, vector<16x16x128xf32>
    tpu.vector_store %arg5[%c1, %c8, %c0_2], %0 {strides = array<i32>} : memref<18x25x128xf32, #tpu.memory_space<vmem>>, vector<16x16x128xf32>,
    %c1_3 = arith.constant 1 : index
    %c0_4 = arith.constant 0 : index
    %c0_5 = arith.constant 0 : index
    %2 = vector.load %arg3[%c1_3, %c0_4, %c0_5] : memref<16x16x128xf32, #tpu.memory_space<vmem>>, vector<1x16x128xf32>
    %c0_6 = arith.constant 0 : index
    %c8_7 = arith.constant 8 : index
    %c0_8 = arith.constant 0 : index
    %3 = vector.load %arg5[%c0_6, %c8_7, %c0_8] : memref<18x25x128xf32, #tpu.memory_space<vmem>>, vector<1x16x128xf32>
    tpu.vector_store %arg5[%c0_6, %c8_7, %c0_8], %2 {strides = array<i32>} : memref<18x25x128xf32, #tpu.memory_space<vmem>>, vector<1x16x128xf32>,
    %c14 = arith.constant 14 : index
    %c0_9 = arith.constant 0 : index
    %c0_10 = arith.constant 0 : index
    %4 = vector.load %arg3[%c14, %c0_9, %c0_10] : memref<16x16x128xf32, #tpu.memory_space<vmem>>, vector<1x16x128xf32>
    %c17 = arith.constant 17 : index
    %c8_11 = arith.constant 8 : index
    %c0_12 = arith.constant 0 : index
    %5 = vector.load %arg5[%c17, %c8_11, %c0_12] : memref<18x25x128xf32, #tpu.memory_space<vmem>>, vector<1x16x128xf32>
    tpu.vector_store %arg5[%c17, %c8_11, %c0_12], %4 {strides = array<i32>} : memref<18x25x128xf32, #tpu.memory_space<vmem>>, vector<1x16x128xf32>,
    %c0_13 = arith.constant 0 : index
    %c9 = arith.constant 9 : index
    %c0_14 = arith.constant 0 : index
    %6 = vector.load %arg5[%c0_13, %c9, %c0_14] : memref<18x25x128xf32, #tpu.memory_space<vmem>>, vector<18x1x128xf32>
    %c0_15 = arith.constant 0 : index
    %c7 = arith.constant 7 : index
    %c0_16 = arith.constant 0 : index
    %7 = vector.load %arg5[%c0_15, %c7, %c0_16] : memref<18x25x128xf32, #tpu.memory_space<vmem>>, vector<18x1x128xf32>
    tpu.vector_store %arg5[%c0_15, %c7, %c0_16], %6 {strides = array<i32>} : memref<18x25x128xf32, #tpu.memory_space<vmem>>, vector<18x1x128xf32>,
    %c0_17 = arith.constant 0 : index
    %c22 = arith.constant 22 : index
    %c0_18 = arith.constant 0 : index
    %8 = vector.load %arg5[%c0_17, %c22, %c0_18] : memref<18x25x128xf32, #tpu.memory_space<vmem>>, vector<18x1x128xf32>
    %c0_19 = arith.constant 0 : index
    %c24 = arith.constant 24 : index
    %c0_20 = arith.constant 0 : index
    %9 = vector.load %arg5[%c0_19, %c24, %c0_20] : memref<18x25x128xf32, #tpu.memory_space<vmem>>, vector<18x1x128xf32>
    tpu.vector_store %arg5[%c0_19, %c24, %c0_20], %8 {strides = array<i32>} : memref<18x25x128xf32, #tpu.memory_space<vmem>>, vector<18x1x128xf32>,
    %c0_21 = arith.constant 0 : index
    %c0_22 = arith.constant 0 : index
    %10 = vector.load %arg2[%c0_21, %c0_22] : memref<1x128xf32, #tpu.memory_space<vmem>>, vector<1x128xf32>
    %11 = vector.shape_cast %10 : vector<1x128xf32> to vector<1x1x128xf32>
    %12 = vector.shape_cast %11 : vector<1x1x128xf32> to vector<1x1x128xf32>
    %13 = vector.broadcast %12 : vector<1x1x128xf32> to vector<8x16x128xf32>
    %c0_23 = arith.constant 0 : index
    %c7_24 = arith.constant 7 : index
    %c0_25 = arith.constant 0 : index
    %14 = vector.load %arg5[%c0_23, %c7_24, %c0_25] : memref<18x25x128xf32, #tpu.memory_space<vmem>>, vector<8x16x128xf32>
    %c0_26 = arith.constant 0 : index
    %c0_27 = arith.constant 0 : index
    %15 = vector.load %arg1[%c0_26, %c0_27] : memref<9x128xf32, #tpu.memory_space<vmem>>, vector<1x128xf32>
    %16 = vector.shape_cast %15 : vector<1x128xf32> to vector<1x1x128xf32>
    %17 = vector.broadcast %16 : vector<1x1x128xf32> to vector<8x16x128xf32>
    %18 = arith.mulf %14, %17 : vector<8x16x128xf32>
    %19 = arith.addf %13, %18 : vector<8x16x128xf32>
    %c0_28 = arith.constant 0 : index
    %c8_29 = arith.constant 8 : index
    %c0_30 = arith.constant 0 : index
    %20 = vector.load %arg5[%c0_28, %c8_29, %c0_30] : memref<18x25x128xf32, #tpu.memory_space<vmem>>, vector<8x16x128xf32>
    %c1_31 = arith.constant 1 : index
    %c0_32 = arith.constant 0 : index
    %21 = vector.load %arg1[%c1_31, %c0_32] : memref<9x128xf32, #tpu.memory_space<vmem>>, vector<1x128xf32>
    %22 = vector.shape_cast %21 : vector<1x128xf32> to vector<1x1x128xf32>
    %23 = vector.broadcast %22 : vector<1x1x128xf32> to vector<8x16x128xf32>
    %24 = arith.mulf %20, %23 : vector<8x16x128xf32>
    %25 = arith.addf %19, %24 : vector<8x16x128xf32>
    %c0_33 = arith.constant 0 : index
    %c9_34 = arith.constant 9 : index
    %c0_35 = arith.constant 0 : index
    %26 = vector.load %arg5[%c0_33, %c9_34, %c0_35] : memref<18x25x128xf32, #tpu.memory_space<vmem>>, vector<8x16x128xf32>
    %c2 = arith.constant 2 : index
    %c0_36 = arith.constant 0 : index
    %27 = vector.load %arg1[%c2, %c0_36] : memref<9x128xf32, #tpu.memory_space<vmem>>, vector<1x128xf32>
    %28 = vector.shape_cast %27 : vector<1x128xf32> to vector<1x1x128xf32>
    %29 = vector.broadcast %28 : vector<1x1x128xf32> to vector<8x16x128xf32>
    %30 = arith.mulf %26, %29 : vector<8x16x128xf32>
    %31 = arith.addf %25, %30 : vector<8x16x128xf32>
    %c1_37 = arith.constant 1 : index
    %c7_38 = arith.constant 7 : index
    %c0_39 = arith.constant 0 : index
    %32 = vector.load %arg5[%c1_37, %c7_38, %c0_39] : memref<18x25x128xf32, #tpu.memory_space<vmem>>, vector<8x16x128xf32>
    %c3 = arith.constant 3 : index
    %c0_40 = arith.constant 0 : index
    %33 = vector.load %arg1[%c3, %c0_40] : memref<9x128xf32, #tpu.memory_space<vmem>>, vector<1x128xf32>
    %34 = vector.shape_cast %33 : vector<1x128xf32> to vector<1x1x128xf32>
    %35 = vector.broadcast %34 : vector<1x1x128xf32> to vector<8x16x128xf32>
    %36 = arith.mulf %32, %35 : vector<8x16x128xf32>
    %37 = arith.addf %31, %36 : vector<8x16x128xf32>
    %c1_41 = arith.constant 1 : index
    %c8_42 = arith.constant 8 : index
    %c0_43 = arith.constant 0 : index
    %38 = vector.load %arg5[%c1_41, %c8_42, %c0_43] : memref<18x25x128xf32, #tpu.memory_space<vmem>>, vector<8x16x128xf32>
    %c4 = arith.constant 4 : index
    %c0_44 = arith.constant 0 : index
    %39 = vector.load %arg1[%c4, %c0_44] : memref<9x128xf32, #tpu.memory_space<vmem>>, vector<1x128xf32>
    %40 = vector.shape_cast %39 : vector<1x128xf32> to vector<1x1x128xf32>
    %41 = vector.broadcast %40 : vector<1x1x128xf32> to vector<8x16x128xf32>
    %42 = arith.mulf %38, %41 : vector<8x16x128xf32>
    %43 = arith.addf %37, %42 : vector<8x16x128xf32>
    %c1_45 = arith.constant 1 : index
    %c9_46 = arith.constant 9 : index
    %c0_47 = arith.constant 0 : index
    %44 = vector.load %arg5[%c1_45, %c9_46, %c0_47] : memref<18x25x128xf32, #tpu.memory_space<vmem>>, vector<8x16x128xf32>
    %c5 = arith.constant 5 : index
    %c0_48 = arith.constant 0 : index
    %45 = vector.load %arg1[%c5, %c0_48] : memref<9x128xf32, #tpu.memory_space<vmem>>, vector<1x128xf32>
    %46 = vector.shape_cast %45 : vector<1x128xf32> to vector<1x1x128xf32>
    %47 = vector.broadcast %46 : vector<1x1x128xf32> to vector<8x16x128xf32>
    %48 = arith.mulf %44, %47 : vector<8x16x128xf32>
    %49 = arith.addf %43, %48 : vector<8x16x128xf32>
    %c2_49 = arith.constant 2 : index
    %c7_50 = arith.constant 7 : index
    %c0_51 = arith.constant 0 : index
    %50 = vector.load %arg5[%c2_49, %c7_50, %c0_51] : memref<18x25x128xf32, #tpu.memory_space<vmem>>, vector<8x16x128xf32>
    %c6 = arith.constant 6 : index
    %c0_52 = arith.constant 0 : index
    %51 = vector.load %arg1[%c6, %c0_52] : memref<9x128xf32, #tpu.memory_space<vmem>>, vector<1x128xf32>
    %52 = vector.shape_cast %51 : vector<1x128xf32> to vector<1x1x128xf32>
    %53 = vector.broadcast %52 : vector<1x1x128xf32> to vector<8x16x128xf32>
    %54 = arith.mulf %50, %53 : vector<8x16x128xf32>
    %55 = arith.addf %49, %54 : vector<8x16x128xf32>
    %c2_53 = arith.constant 2 : index
    %c8_54 = arith.constant 8 : index
    %c0_55 = arith.constant 0 : index
    %56 = vector.load %arg5[%c2_53, %c8_54, %c0_55] : memref<18x25x128xf32, #tpu.memory_space<vmem>>, vector<8x16x128xf32>
    %c7_56 = arith.constant 7 : index
    %c0_57 = arith.constant 0 : index
    %57 = vector.load %arg1[%c7_56, %c0_57] : memref<9x128xf32, #tpu.memory_space<vmem>>, vector<1x128xf32>
    %58 = vector.shape_cast %57 : vector<1x128xf32> to vector<1x1x128xf32>
    %59 = vector.broadcast %58 : vector<1x1x128xf32> to vector<8x16x128xf32>
    %60 = arith.mulf %56, %59 : vector<8x16x128xf32>
    %61 = arith.addf %55, %60 : vector<8x16x128xf32>
    %c2_58 = arith.constant 2 : index
    %c9_59 = arith.constant 9 : index
    %c0_60 = arith.constant 0 : index
    %62 = vector.load %arg5[%c2_58, %c9_59, %c0_60] : memref<18x25x128xf32, #tpu.memory_space<vmem>>, vector<8x16x128xf32>
    %c8_61 = arith.constant 8 : index
    %c0_62 = arith.constant 0 : index
    %63 = vector.load %arg1[%c8_61, %c0_62] : memref<9x128xf32, #tpu.memory_space<vmem>>, vector<1x128xf32>
    %64 = vector.shape_cast %63 : vector<1x128xf32> to vector<1x1x128xf32>
    %65 = vector.broadcast %64 : vector<1x1x128xf32> to vector<8x16x128xf32>
    %66 = arith.mulf %62, %65 : vector<8x16x128xf32>
    %67 = arith.addf %61, %66 : vector<8x16x128xf32>
    %c0_63 = arith.constant 0 : index
    %c0_64 = arith.constant 0 : index
    %c0_65 = arith.constant 0 : index
    %68 = vector.load %arg4[%c0_63, %c0_64, %c0_65] : memref<16x16x128xf32, #tpu.memory_space<vmem>>, vector<8x16x128xf32>
    tpu.vector_store %arg4[%c0_63, %c0_64, %c0_65], %67 {strides = array<i32>} : memref<16x16x128xf32, #tpu.memory_space<vmem>>, vector<8x16x128xf32>,
    %69 = vector.shape_cast %11 : vector<1x1x128xf32> to vector<1x1x128xf32>
    %70 = vector.broadcast %69 : vector<1x1x128xf32> to vector<8x16x128xf32>
    %c8_66 = arith.constant 8 : index
    %c7_67 = arith.constant 7 : index
    %c0_68 = arith.constant 0 : index
    %71 = vector.load %arg5[%c8_66, %c7_67, %c0_68] : memref<18x25x128xf32, #tpu.memory_space<vmem>>, vector<8x16x128xf32>
    %c0_69 = arith.constant 0 : index
    %c0_70 = arith.constant 0 : index
    %72 = vector.load %arg1[%c0_69, %c0_70] : memref<9x128xf32, #tpu.memory_space<vmem>>, vector<1x128xf32>
    %73 = vector.shape_cast %72 : vector<1x128xf32> to vector<1x1x128xf32>
    %74 = vector.broadcast %73 : vector<1x1x128xf32> to vector<8x16x128xf32>
    %75 = arith.mulf %71, %74 : vector<8x16x128xf32>
    %76 = arith.addf %70, %75 : vector<8x16x128xf32>
    %c8_71 = arith.constant 8 : index
    %c8_72 = arith.constant 8 : index
    %c0_73 = arith.constant 0 : index
    %77 = vector.load %arg5[%c8_71, %c8_72, %c0_73] : memref<18x25x128xf32, #tpu.memory_space<vmem>>, vector<8x16x128xf32>
    %c1_74 = arith.constant 1 : index
    %c0_75 = arith.constant 0 : index
    %78 = vector.load %arg1[%c1_74, %c0_75] : memref<9x128xf32, #tpu.memory_space<vmem>>, vector<1x128xf32>
    %79 = vector.shape_cast %78 : vector<1x128xf32> to vector<1x1x128xf32>
    %80 = vector.broadcast %79 : vector<1x1x128xf32> to vector<8x16x128xf32>
    %81 = arith.mulf %77, %80 : vector<8x16x128xf32>
    %82 = arith.addf %76, %81 : vector<8x16x128xf32>
    %c8_76 = arith.constant 8 : index
    %c9_77 = arith.constant 9 : index
    %c0_78 = arith.constant 0 : index
    %83 = vector.load %arg5[%c8_76, %c9_77, %c0_78] : memref<18x25x128xf32, #tpu.memory_space<vmem>>, vector<8x16x128xf32>
    %c2_79 = arith.constant 2 : index
    %c0_80 = arith.constant 0 : index
    %84 = vector.load %arg1[%c2_79, %c0_80] : memref<9x128xf32, #tpu.memory_space<vmem>>, vector<1x128xf32>
    %85 = vector.shape_cast %84 : vector<1x128xf32> to vector<1x1x128xf32>
    %86 = vector.broadcast %85 : vector<1x1x128xf32> to vector<8x16x128xf32>
    %87 = arith.mulf %83, %86 : vector<8x16x128xf32>
    %88 = arith.addf %82, %87 : vector<8x16x128xf32>
    %c9_81 = arith.constant 9 : index
    %c7_82 = arith.constant 7 : index
    %c0_83 = arith.constant 0 : index
    %89 = vector.load %arg5[%c9_81, %c7_82, %c0_83] : memref<18x25x128xf32, #tpu.memory_space<vmem>>, vector<8x16x128xf32>
    %c3_84 = arith.constant 3 : index
    %c0_85 = arith.constant 0 : index
    %90 = vector.load %arg1[%c3_84, %c0_85] : memref<9x128xf32, #tpu.memory_space<vmem>>, vector<1x128xf32>
    %91 = vector.shape_cast %90 : vector<1x128xf32> to vector<1x1x128xf32>
    %92 = vector.broadcast %91 : vector<1x1x128xf32> to vector<8x16x128xf32>
    %93 = arith.mulf %89, %92 : vector<8x16x128xf32>
    %94 = arith.addf %88, %93 : vector<8x16x128xf32>
    %c9_86 = arith.constant 9 : index
    %c8_87 = arith.constant 8 : index
    %c0_88 = arith.constant 0 : index
    %95 = vector.load %arg5[%c9_86, %c8_87, %c0_88] : memref<18x25x128xf32, #tpu.memory_space<vmem>>, vector<8x16x128xf32>
    %c4_89 = arith.constant 4 : index
    %c0_90 = arith.constant 0 : index
    %96 = vector.load %arg1[%c4_89, %c0_90] : memref<9x128xf32, #tpu.memory_space<vmem>>, vector<1x128xf32>
    %97 = vector.shape_cast %96 : vector<1x128xf32> to vector<1x1x128xf32>
    %98 = vector.broadcast %97 : vector<1x1x128xf32> to vector<8x16x128xf32>
    %99 = arith.mulf %95, %98 : vector<8x16x128xf32>
    %100 = arith.addf %94, %99 : vector<8x16x128xf32>
    %c9_91 = arith.constant 9 : index
    %c9_92 = arith.constant 9 : index
    %c0_93 = arith.constant 0 : index
    %101 = vector.load %arg5[%c9_91, %c9_92, %c0_93] : memref<18x25x128xf32, #tpu.memory_space<vmem>>, vector<8x16x128xf32>
    %c5_94 = arith.constant 5 : index
    %c0_95 = arith.constant 0 : index
    %102 = vector.load %arg1[%c5_94, %c0_95] : memref<9x128xf32, #tpu.memory_space<vmem>>, vector<1x128xf32>
    %103 = vector.shape_cast %102 : vector<1x128xf32> to vector<1x1x128xf32>
    %104 = vector.broadcast %103 : vector<1x1x128xf32> to vector<8x16x128xf32>
    %105 = arith.mulf %101, %104 : vector<8x16x128xf32>
    %106 = arith.addf %100, %105 : vector<8x16x128xf32>
    %c10 = arith.constant 10 : index
    %c7_96 = arith.constant 7 : index
    %c0_97 = arith.constant 0 : index
    %107 = vector.load %arg5[%c10, %c7_96, %c0_97] : memref<18x25x128xf32, #tpu.memory_space<vmem>>, vector<8x16x128xf32>
    %c6_98 = arith.constant 6 : index
    %c0_99 = arith.constant 0 : index
    %108 = vector.load %arg1[%c6_98, %c0_99] : memref<9x128xf32, #tpu.memory_space<vmem>>, vector<1x128xf32>
    %109 = vector.shape_cast %108 : vector<1x128xf32> to vector<1x1x128xf32>
    %110 = vector.broadcast %109 : vector<1x1x128xf32> to vector<8x16x128xf32>
    %111 = arith.mulf %107, %110 : vector<8x16x128xf32>
    %112 = arith.addf %106, %111 : vector<8x16x128xf32>
    %c10_100 = arith.constant 10 : index
    %c8_101 = arith.constant 8 : index
    %c0_102 = arith.constant 0 : index
    %113 = vector.load %arg5[%c10_100, %c8_101, %c0_102] : memref<18x25x128xf32, #tpu.memory_space<vmem>>, vector<8x16x128xf32>
    %c7_103 = arith.constant 7 : index
    %c0_104 = arith.constant 0 : index
    %114 = vector.load %arg1[%c7_103, %c0_104] : memref<9x128xf32, #tpu.memory_space<vmem>>, vector<1x128xf32>
    %115 = vector.shape_cast %114 : vector<1x128xf32> to vector<1x1x128xf32>
    %116 = vector.broadcast %115 : vector<1x1x128xf32> to vector<8x16x128xf32>
    %117 = arith.mulf %113, %116 : vector<8x16x128xf32>
    %118 = arith.addf %112, %117 : vector<8x16x128xf32>
    %c10_105 = arith.constant 10 : index
    %c9_106 = arith.constant 9 : index
    %c0_107 = arith.constant 0 : index
    %119 = vector.load %arg5[%c10_105, %c9_106, %c0_107] : memref<18x25x128xf32, #tpu.memory_space<vmem>>, vector<8x16x128xf32>
    %c8_108 = arith.constant 8 : index
    %c0_109 = arith.constant 0 : index
    %120 = vector.load %arg1[%c8_108, %c0_109] : memref<9x128xf32, #tpu.memory_space<vmem>>, vector<1x128xf32>
    %121 = vector.shape_cast %120 : vector<1x128xf32> to vector<1x1x128xf32>
    %122 = vector.broadcast %121 : vector<1x1x128xf32> to vector<8x16x128xf32>
    %123 = arith.mulf %119, %122 : vector<8x16x128xf32>
    %124 = arith.addf %118, %123 : vector<8x16x128xf32>
    %c8_110 = arith.constant 8 : index
    %c0_111 = arith.constant 0 : index
    %c0_112 = arith.constant 0 : index
    %125 = vector.load %arg4[%c8_110, %c0_111, %c0_112] : memref<16x16x128xf32, #tpu.memory_space<vmem>>, vector<8x16x128xf32>
    tpu.vector_store %arg4[%c8_110, %c0_111, %c0_112], %124 {strides = array<i32>} : memref<16x16x128xf32, #tpu.memory_space<vmem>>, vector<8x16x128xf32>,
    return
  }
  func.func @transform_0(%arg0: i32) -> (i32, i32) {
    %c0_i32 = arith.constant 0 : i32
    %c0_i32_0 = arith.constant 0 : i32
    return %c0_i32, %arg0 : i32, i32
  }
  func.func @transform_1(%arg0: i32) -> (i32, i32) {
    %c0_i32 = arith.constant 0 : i32
    %c0_i32_0 = arith.constant 0 : i32
    return %c0_i32, %arg0 : i32, i32
  }
  func.func @transform_2(%arg0: i32) -> (i32, i32, i32) {
    %c0_i32 = arith.constant 0 : i32
    %c0_i32_0 = arith.constant 0 : i32
    %c0_i32_1 = arith.constant 0 : i32
    return %c0_i32, %c0_i32_0, %arg0 : i32, i32, i32
  }
  func.func @transform_3(%arg0: i32) -> (i32, i32, i32) {
    %c0_i32 = arith.constant 0 : i32
    %c0_i32_0 = arith.constant 0 : i32
    %c0_i32_1 = arith.constant 0 : i32
    return %c0_i32, %c0_i32_0, %arg0 : i32, i32, i32
  }
}

</mosaic_0001>

<llo_original>
// kernel: tpu_custom_call.1
$region0: #{tpu_custom_call.1}
  #allocation0 [shape = 'u32[]', space=smem, size = 0x4, offset = 0x4, fixed_abs, tag = 'smem constant byte address 0x4 - core index']
  #allocation1 [shape = 'u32[144,128]{1,0:T(1,128)}', space=vmem, size = 0x12000, scoped, tag = 'internal scratch']
  #allocation2 [shape = 'f32[18,25,128]{2,1,0:T(8,128)}', space=vmem, size = 0x48000, scoped, tag = 'scratch operand']
  %s0 = inlined_call_operand.hbm [shape: f32[9,128], index: 0, kind: input, shape index: {}]
  %s1 = inlined_call_operand.vmem [shape: f32[1,128], index: 1, kind: input, shape index: {}]
  %s2 = inlined_call_operand.hbm [shape: f32[16,16,128], index: 2, kind: input, shape index: {}]
  %s3 = inlined_call_operand.hbm [shape: f32[16,16,128], index: 3, kind: output, shape index: {}]
  %s4 = sld [smem:[#allocation0]]
  $region30: #{tpu_custom_call.1} parent=0
    _
  %s6 = ssub.s32 1, %s4
  %s7 = scalar_select 0, %s6, %s4
  $region1: #{tpu_custom_call.1} parent=0
    #allocation3 [shape = 'u8[8192]{0}', space=vmem, size = 0x2000, scoped, tag = 'input window, operand 0, single buffered']
    #allocation4 [shape = 's32[1]{0}', space=sflag, size = 0x4, scoped, tag = 'scoped memory for tpu_custom_call.1']
    #allocation5 [shape = 's32[1]{0}', space=sflag, size = 0x4, scoped, tag = 'scoped memory for tpu_custom_call.1']
    #allocation6 [shape = 'u8[131072]{0}', space=vmem, size = 0x20000, scoped, tag = 'input window, operand 2, single buffered']
    #allocation7 [shape = 's32[1]{0}', space=sflag, size = 0x4, scoped, tag = 'scoped memory for tpu_custom_call.1']
    #allocation8 [shape = 'u8[131072]{0}', space=vmem, size = 0x20000, scoped, tag = 'output window, operand 0, single buffered']
    %8 = vsyncpa [#allocation4], 0
    %9 = vsyncpa [#allocation7], 0
    %10 = vsyncpa [#allocation5], 0
    // Predicated region
    $region2: #{tpu_custom_call.1} parent=1 // pred_check
      _
    $region3: #{tpu_custom_call.1} parent=1 // pred_check_branch
      %12 = sbr.rel (0) target = $region5
    $region4: #{tpu_custom_call.1} parent=1 // pred_region
      %s14 = ssub.s32 256, 256
      %15 = vsyncadd [#allocation4], %s14
      %s16 = sshll.u32 [#allocation3], 4
      %s17 = int_to_ptr.vmem [resolvable:$true] %s16
      %22 = dma.hbm_to_vmem [thread:$0]  %s0, 256, %s17, [#allocation4], 128, 128, 8
    $region5: #{tpu_custom_call.1} parent=1 // pred_fallthru
      _
    // Predicated region
    $region6: #{tpu_custom_call.1} parent=1 // pred_check
      _
    $region7: #{tpu_custom_call.1} parent=1 // pred_check_branch
      %24 = sbr.rel (0) target = $region9
    $region8: #{tpu_custom_call.1} parent=1 // pred_region
      _
    $region9: #{tpu_custom_call.1} parent=1 // pred_fallthru
      _
    // Predicated region
    $region10: #{tpu_custom_call.1} parent=1 // pred_check
      _
    $region11: #{tpu_custom_call.1} parent=1 // pred_check_branch
      %26 = sbr.rel (0) target = $region13
    $region12: #{tpu_custom_call.1} parent=1 // pred_region
      %s28 = ssub.s32 4096, 4096
      %29 = vsyncadd [#allocation7], %s28
      %s30 = sshll.u32 [#allocation6], 4
      %s31 = int_to_ptr.vmem [resolvable:$true] %s30
      %36 = dma.hbm_to_vmem [thread:$0]  %s2, 4096, %s31, [#allocation7], 128, 128, 8
    $region13: #{tpu_custom_call.1} parent=1 // pred_fallthru
      _
    // Predicated region
    $region14: #{tpu_custom_call.1} parent=1 // pred_check
      _
    $region15: #{tpu_custom_call.1} parent=1 // pred_check_branch
      %38 = sbr.rel (0) target = $region17
    $region16: #{tpu_custom_call.1} parent=1 // pred_region
      %39 = dma.done [#allocation4], 256
    $region17: #{tpu_custom_call.1} parent=1 // pred_fallthru
      _
    // Predicated region
    $region18: #{tpu_custom_call.1} parent=1 // pred_check
      _
    $region19: #{tpu_custom_call.1} parent=1 // pred_check_branch
      %41 = sbr.rel (0) target = $region21
    $region20: #{tpu_custom_call.1} parent=1 // pred_region
      %42 = dma.done [#allocation7], 4096
    $region21: #{tpu_custom_call.1} parent=1 // pred_fallthru
      _
    %v43 = vld [vmem:[#allocation6] sm:$0xff]
    %v44 = vld [vmem:[#allocation6 + $0x8] sm:$0xff]
    %v45 = vld [vmem:[#allocation6 + $0x10] sm:$0xff]
    %v46 = vld [vmem:[#allocation6 + $0x18] sm:$0xff]
    %v47 = vld [vmem:[#allocation6 + $0x20] sm:$0xff]
    %v48 = vld [vmem:[#allocation6 + $0x28] sm:$0xff]
    %v49 = vld [vmem:[#allocation6 + $0x30] sm:$0xff]
    %v50 = vld [vmem:[#allocation6 + $0x38] sm:$0xff]
    %v51 = vld [vmem:[#allocation6 + $0x40] sm:$0xff]
    %v52 = vld [vmem:[#allocation6 + $0x48] sm:$0xff]
    %v53 = vld [vmem:[#allocation6 + $0x50] sm:$0xff]
    %v54 = vld [vmem:[#allocation6 + $0x58] sm:$0xff]
    %v55 = vld [vmem:[#allocation6 + $0x60] sm:$0xff]
    %v56 = vld [vmem:[#allocation6 + $0x68] sm:$0xff]
    %v57 = vld [vmem:[#allocation6 + $0x70] sm:$0xff]
    %v58 = vld [vmem:[#allocation6 + $0x78] sm:$0xff]
    %v59 = vld [vmem:[#allocation6 + $0x80] sm:$0xff]
    %v60 = vld [vmem:[#allocation6 + $0x88] sm:$0xff]
    %v61 = vld [vmem:[#allocation6 + $0x90] sm:$0xff]
    %v62 = vld [vmem:[#allocation6 + $0x98] sm:$0xff]
    %v63 = vld [vmem:[#allocation6 + $0xa0] sm:$0xff]
    %v64 = vld [vmem:[#allocation6 + $0xa8] sm:$0xff]
    %v65 = vld [vmem:[#allocation6 + $0xb0] sm:$0xff]
    %v66 = vld [vmem:[#allocation6 + $0xb8] sm:$0xff]
    %v67 = vld [vmem:[#allocation6 + $0xc0] sm:$0xff]
    %v68 = vld [vmem:[#allocation6 + $0xc8] sm:$0xff]
    %v69 = vld [vmem:[#allocation6 + $0xd0] sm:$0xff]
    %v70 = vld [vmem:[#allocation6 + $0xd8] sm:$0xff]
    %v71 = vld [vmem:[#allocation6 + $0xe0] sm:$0xff]
    %v72 = vld [vmem:[#allocation6 + $0xe8] sm:$0xff]
    %v73 = vld [vmem:[#allocation6 + $0xf0] sm:$0xff]
    %v74 = vld [vmem:[#allocation6 + $0xf8] sm:$0xff]
    %s75 = scalar_lea.vmem [#allocation2], 32
    %76 = vst [vmem:[%s75 + $0x8] sm:$0xff] %v43
    %77 = vst [vmem:[%s75 + $0x10] sm:$0xff] %v44
    %78 = vst [vmem:[%s75 + $0x28] sm:$0xff] %v45
    %79 = vst [vmem:[%s75 + $0x30] sm:$0xff] %v46
    %80 = vst [vmem:[%s75 + $0x48] sm:$0xff] %v47
    %81 = vst [vmem:[%s75 + $0x50] sm:$0xff] %v48
    %82 = vst [vmem:[%s75 + $0x68] sm:$0xff] %v49
    %83 = vst [vmem:[%s75 + $0x70] sm:$0xff] %v50
    %84 = vst [vmem:[%s75 + $0x88] sm:$0xff] %v51
    %85 = vst [vmem:[%s75 + $0x90] sm:$0xff] %v52
    %86 = vst [vmem:[%s75 + $0xa8] sm:$0xff] %v53
    %87 = vst [vmem:[%s75 + $0xb0] sm:$0xff] %v54
    %88 = vst [vmem:[%s75 + $0xc8] sm:$0xff] %v55
    %89 = vst [vmem:[%s75 + $0xd0] sm:$0xff] %v56
    %90 = vst [vmem:[%s75 + $0xe8] sm:$0xff] %v57
    %91 = vst [vmem:[%s75 + $0xf0] sm:$0xff] %v58
    %92 = vst [vmem:[%s75 + $0x108] sm:$0xff] %v59
    %93 = vst [vmem:[%s75 + $0x110] sm:$0xff] %v60
    %94 = vst [vmem:[%s75 + $0x128] sm:$0xff] %v61
    %95 = vst [vmem:[%s75 + $0x130] sm:$0xff] %v62
    %96 = vst [vmem:[%s75 + $0x148] sm:$0xff] %v63
    %97 = vst [vmem:[%s75 + $0x150] sm:$0xff] %v64
    %98 = vst [vmem:[%s75 + $0x168] sm:$0xff] %v65
    %99 = vst [vmem:[%s75 + $0x170] sm:$0xff] %v66
    %100 = vst [vmem:[%s75 + $0x188] sm:$0xff] %v67
    %101 = vst [vmem:[%s75 + $0x190] sm:$0xff] %v68
    %102 = vst [vmem:[%s75 + $0x1a8] sm:$0xff] %v69
    %103 = vst [vmem:[%s75 + $0x1b0] sm:$0xff] %v70
    %104 = vst [vmem:[%s75 + $0x1c8] sm:$0xff] %v71
    %105 = vst [vmem:[%s75 + $0x1d0] sm:$0xff] %v72
    %106 = vst [vmem:[%s75 + $0x1e8] sm:$0xff] %v73
    %107 = vst [vmem:[%s75 + $0x1f0] sm:$0xff] %v74
    %s108 = scalar_lea.vmem [#allocation6], 16
    %v109 = vld [vmem:[%s108] sm:$0xff]
    %v110 = vld [vmem:[%s108 + $0x8] sm:$0xff]
    %111 = vst [vmem:[#allocation2 + $0x8] sm:$0xff] %v109
    %112 = vst [vmem:[#allocation2 + $0x10] sm:$0xff] %v110
    %s113 = scalar_lea.vmem [#allocation6], 224
    %v114 = vld [vmem:[%s113] sm:$0xff]
    %v115 = vld [vmem:[%s113 + $0x8] sm:$0xff]
    %s116 = scalar_lea.vmem [#allocation2], 544
    %117 = vst [vmem:[%s116 + $0x8] sm:$0xff] %v114
    %118 = vst [vmem:[%s116 + $0x10] sm:$0xff] %v115
    %v119 = vld [vmem:[#allocation2 + $0x9] sm:$0x1]
    %v120 = vld [vmem:[#allocation2 + $0x29] sm:$0x1]
    %v121 = vld [vmem:[#allocation2 + $0x49] sm:$0x1]
    %v122 = vld [vmem:[#allocation2 + $0x69] sm:$0x1]
    %v123 = vld [vmem:[#allocation2 + $0x89] sm:$0x1]
    %v124 = vld [vmem:[#allocation2 + $0xa9] sm:$0x1]
    %v125 = vld [vmem:[#allocation2 + $0xc9] sm:$0x1]
    %v126 = vld [vmem:[#allocation2 + $0xe9] sm:$0x1]
    %v127 = vld [vmem:[#allocation2 + $0x109] sm:$0x1]
    %v128 = vld [vmem:[#allocation2 + $0x129] sm:$0x1]
    %v129 = vld [vmem:[#allocation2 + $0x149] sm:$0x1]
    %v130 = vld [vmem:[#allocation2 + $0x169] sm:$0x1]
    %v131 = vld [vmem:[#allocation2 + $0x189] sm:$0x1]
    %v132 = vld [vmem:[#allocation2 + $0x1a9] sm:$0x1]
    %v133 = vld [vmem:[#allocation2 + $0x1c9] sm:$0x1]
    %v134 = vld [vmem:[#allocation2 + $0x1e9] sm:$0x1]
    %v135 = vld [vmem:[#allocation2 + $0x209] sm:$0x1]
    %v136 = vld [vmem:[#allocation2 + $0x229] sm:$0x1]
    %137 = vst [vmem:[#allocation2 + $0x7] sm:$0x1] %v119
    %138 = vst [vmem:[#allocation2 + $0x27] sm:$0x1] %v120
    %139 = vst [vmem:[#allocation2 + $0x47] sm:$0x1] %v121
    %140 = vst [vmem:[#allocation2 + $0x67] sm:$0x1] %v122
    %141 = vst [vmem:[#allocation2 + $0x87] sm:$0x1] %v123
    %142 = vst [vmem:[#allocation2 + $0xa7] sm:$0x1] %v124
    %143 = vst [vmem:[#allocation2 + $0xc7] sm:$0x1] %v125
    %144 = vst [vmem:[#allocation2 + $0xe7] sm:$0x1] %v126
    %145 = vst [vmem:[#allocation2 + $0x107] sm:$0x1] %v127
    %146 = vst [vmem:[#allocation2 + $0x127] sm:$0x1] %v128
    %147 = vst [vmem:[#allocation2 + $0x147] sm:$0x1] %v129
    %148 = vst [vmem:[#allocation2 + $0x167] sm:$0x1] %v130
    %149 = vst [vmem:[#allocation2 + $0x187] sm:$0x1] %v131
    %150 = vst [vmem:[#allocation2 + $0x1a7] sm:$0x1] %v132
    %151 = vst [vmem:[#allocation2 + $0x1c7] sm:$0x1] %v133
    %152 = vst [vmem:[#allocation2 + $0x1e7] sm:$0x1] %v134
    %153 = vst [vmem:[#allocation2 + $0x207] sm:$0x1] %v135
    %154 = vst [vmem:[#allocation2 + $0x227] sm:$0x1] %v136
    %v155 = vld [vmem:[#allocation2 + $0x16] sm:$0x1]
    %v156 = vld [vmem:[#allocation2 + $0x36] sm:$0x1]
    %v157 = vld [vmem:[#allocation2 + $0x56] sm:$0x1]
    %v158 = vld [vmem:[#allocation2 + $0x76] sm:$0x1]
    %v159 = vld [vmem:[#allocation2 + $0x96] sm:$0x1]
    %v160 = vld [vmem:[#allocation2 + $0xb6] sm:$0x1]
    %v161 = vld [vmem:[#allocation2 + $0xd6] sm:$0x1]
    %v162 = vld [vmem:[#allocation2 + $0xf6] sm:$0x1]
    %v163 = vld [vmem:[#allocation2 + $0x116] sm:$0x1]
    %v164 = vld [vmem:[#allocation2 + $0x136] sm:$0x1]
    %v165 = vld [vmem:[#allocation2 + $0x156] sm:$0x1]
    %v166 = vld [vmem:[#allocation2 + $0x176] sm:$0x1]
    %v167 = vld [vmem:[#allocation2 + $0x196] sm:$0x1]
    %v168 = vld [vmem:[#allocation2 + $0x1b6] sm:$0x1]
    %v169 = vld [vmem:[#allocation2 + $0x1d6] sm:$0x1]
    %v170 = vld [vmem:[#allocation2 + $0x1f6] sm:$0x1]
    %v171 = vld [vmem:[#allocation2 + $0x216] sm:$0x1]
    %v172 = vld [vmem:[#allocation2 + $0x236] sm:$0x1]
    %173 = vst [vmem:[#allocation2 + $0x18] sm:$0x1] %v155
    %174 = vst [vmem:[#allocation2 + $0x38] sm:$0x1] %v156
    %175 = vst [vmem:[#allocation2 + $0x58] sm:$0x1] %v157
    %176 = vst [vmem:[#allocation2 + $0x78] sm:$0x1] %v158
    %177 = vst [vmem:[#allocation2 + $0x98] sm:$0x1] %v159
    %178 = vst [vmem:[#allocation2 + $0xb8] sm:$0x1] %v160
    %179 = vst [vmem:[#allocation2 + $0xd8] sm:$0x1] %v161
    %180 = vst [vmem:[#allocation2 + $0xf8] sm:$0x1] %v162
    %181 = vst [vmem:[#allocation2 + $0x118] sm:$0x1] %v163
    %182 = vst [vmem:[#allocation2 + $0x138] sm:$0x1] %v164
    %183 = vst [vmem:[#allocation2 + $0x158] sm:$0x1] %v165
    %184 = vst [vmem:[#allocation2 + $0x178] sm:$0x1] %v166
    %185 = vst [vmem:[#allocation2 + $0x198] sm:$0x1] %v167
    %186 = vst [vmem:[#allocation2 + $0x1b8] sm:$0x1] %v168
    %187 = vst [vmem:[#allocation2 + $0x1d8] sm:$0x1] %v169
    %188 = vst [vmem:[#allocation2 + $0x1f8] sm:$0x1] %v170
    %189 = vst [vmem:[#allocation2 + $0x218] sm:$0x1] %v171
    %190 = vst [vmem:[#allocation2 + $0x238] sm:$0x1] %v172
    %v191 = vld [vmem:[%s1] sm:$0x1]
    %v193 = vlaneseq
    %v194 = vshrl.u32 %v193, 7
    %v195 = vsub.s32 0, %v194
    %v196 = vrot.slane %v191, %v195
    %v198 = vld [vmem:[#allocation2 + $0x7] sm:$0xff]
    %v199 = vld [vmem:[#allocation2 + $0xf] sm:$0xff]
    %v200 = vld [vmem:[#allocation2 + $0x27] sm:$0xff]
    %v201 = vld [vmem:[#allocation2 + $0x2f] sm:$0xff]
    %v202 = vld [vmem:[#allocation2 + $0x47] sm:$0xff]
    %v203 = vld [vmem:[#allocation2 + $0x4f] sm:$0xff]
    %v204 = vld [vmem:[#allocation2 + $0x67] sm:$0xff]
    %v205 = vld [vmem:[#allocation2 + $0x6f] sm:$0xff]
    %v206 = vld [vmem:[#allocation2 + $0x87] sm:$0xff]
    %v207 = vld [vmem:[#allocation2 + $0x8f] sm:$0xff]
    %v208 = vld [vmem:[#allocation2 + $0xa7] sm:$0xff]
    %v209 = vld [vmem:[#allocation2 + $0xaf] sm:$0xff]
    %v210 = vld [vmem:[#allocation2 + $0xc7] sm:$0xff]
    %v211 = vld [vmem:[#allocation2 + $0xcf] sm:$0xff]
    %v212 = vld [vmem:[#allocation2 + $0xe7] sm:$0xff]
    %v213 = vld [vmem:[#allocation2 + $0xef] sm:$0xff]
    %v214 = vld [vmem:[#allocation3] sm:$0x1]
    %v215 = vlaneseq
    %v216 = vshrl.u32 %v215, 7
    %v217 = vsub.s32 0, %v216
    %v218 = vrot.slane %v214, %v217
    %v219 = vmul.f32 %v198, %v218
    %v220 = vmul.f32 %v199, %v218
    %v221 = vmul.f32 %v200, %v218
    %v222 = vmul.f32 %v201, %v218
    %v223 = vmul.f32 %v202, %v218
    %v224 = vmul.f32 %v203, %v218
    %v225 = vmul.f32 %v204, %v218
    %v226 = vmul.f32 %v205, %v218
    %v227 = vmul.f32 %v206, %v218
    %v228 = vmul.f32 %v207, %v218
    %v229 = vmul.f32 %v208, %v218
    %v230 = vmul.f32 %v209, %v218
    %v231 = vmul.f32 %v210, %v218
    %v232 = vmul.f32 %v211, %v218
    %v233 = vmul.f32 %v212, %v218
    %v234 = vmul.f32 %v213, %v218
    %v235 = vadd.f32 %v196, %v219
    %v236 = vadd.f32 %v196, %v220
    %v237 = vadd.f32 %v196, %v221
    %v238 = vadd.f32 %v196, %v222
    %v239 = vadd.f32 %v196, %v223
    %v240 = vadd.f32 %v196, %v224
    %v241 = vadd.f32 %v196, %v225
    %v242 = vadd.f32 %v196, %v226
    %v243 = vadd.f32 %v196, %v227
    %v244 = vadd.f32 %v196, %v228
    %v245 = vadd.f32 %v196, %v229
    %v246 = vadd.f32 %v196, %v230
    %v247 = vadd.f32 %v196, %v231
    %v248 = vadd.f32 %v196, %v232
    %v249 = vadd.f32 %v196, %v233
    %v250 = vadd.f32 %v196, %v234
    %v251 = vld [vmem:[#allocation2 + $0x8] sm:$0xff]
    %v252 = vld [vmem:[#allocation2 + $0x10] sm:$0xff]
    %v253 = vld [vmem:[#allocation2 + $0x28] sm:$0xff]
    %v254 = vld [vmem:[#allocation2 + $0x30] sm:$0xff]
    %v255 = vld [vmem:[#allocation2 + $0x48] sm:$0xff]
    %v256 = vld [vmem:[#allocation2 + $0x50] sm:$0xff]
    %v257 = vld [vmem:[#allocation2 + $0x68] sm:$0xff]
    %v258 = vld [vmem:[#allocation2 + $0x70] sm:$0xff]
    %v259 = vld [vmem:[#allocation2 + $0x88] sm:$0xff]
    %v260 = vld [vmem:[#allocation2 + $0x90] sm:$0xff]
    %v261 = vld [vmem:[#allocation2 + $0xa8] sm:$0xff]
    %v262 = vld [vmem:[#allocation2 + $0xb0] sm:$0xff]
    %v263 = vld [vmem:[#allocation2 + $0xc8] sm:$0xff]
    %v264 = vld [vmem:[#allocation2 + $0xd0] sm:$0xff]
    %v265 = vld [vmem:[#allocation2 + $0xe8] sm:$0xff]
    %v266 = vld [vmem:[#allocation2 + $0xf0] sm:$0xff]
    %v267 = vld [vmem:[#allocation3 + $0x1] sm:$0x1]
    %v268 = vlaneseq
    %v269 = vshrl.u32 %v268, 7
    %v270 = vsub.s32 0, %v269
    %v271 = vrot.slane %v267, %v270
    %v272 = vmul.f32 %v251, %v271
    %v273 = vmul.f32 %v252, %v271
    %v274 = vmul.f32 %v253, %v271
    %v275 = vmul.f32 %v254, %v271
    %v276 = vmul.f32 %v255, %v271
    %v277 = vmul.f32 %v256, %v271
    %v278 = vmul.f32 %v257, %v271
    %v279 = vmul.f32 %v258, %v271
    %v280 = vmul.f32 %v259, %v271
    %v281 = vmul.f32 %v260, %v271
    %v282 = vmul.f32 %v261, %v271
    %v283 = vmul.f32 %v262, %v271
    %v284 = vmul.f32 %v263, %v271
    %v285 = vmul.f32 %v264, %v271
    %v286 = vmul.f32 %v265, %v271
    %v287 = vmul.f32 %v266, %v271
    %v288 = vadd.f32 %v235, %v272
    %v289 = vadd.f32 %v236, %v273
    %v290 = vadd.f32 %v237, %v274
    %v291 = vadd.f32 %v238, %v275
    %v292 = vadd.f32 %v239, %v276
    %v293 = vadd.f32 %v240, %v277
    %v294 = vadd.f32 %v241, %v278
    %v295 = vadd.f32 %v242, %v279
    %v296 = vadd.f32 %v243, %v280
    %v297 = vadd.f32 %v244, %v281
    %v298 = vadd.f32 %v245, %v282
    %v299 = vadd.f32 %v246, %v283
    %v300 = vadd.f32 %v247, %v284
    %v301 = vadd.f32 %v248, %v285
    %v302 = vadd.f32 %v249, %v286
    %v303 = vadd.f32 %v250, %v287
    %v304 = vld [vmem:[#allocation2 + $0x9] sm:$0xff]
    %v305 = vld [vmem:[#allocation2 + $0x11] sm:$0xff]
    %v306 = vld [vmem:[#allocation2 + $0x29] sm:$0xff]
    %v307 = vld [vmem:[#allocation2 + $0x31] sm:$0xff]
    %v308 = vld [vmem:[#allocation2 + $0x49] sm:$0xff]
    %v309 = vld [vmem:[#allocation2 + $0x51] sm:$0xff]
    %v310 = vld [vmem:[#allocation2 + $0x69] sm:$0xff]
    %v311 = vld [vmem:[#allocation2 + $0x71] sm:$0xff]
    %v312 = vld [vmem:[#allocation2 + $0x89] sm:$0xff]
    %v313 = vld [vmem:[#allocation2 + $0x91] sm:$0xff]
    %v314 = vld [vmem:[#allocation2 + $0xa9] sm:$0xff]
    %v315 = vld [vmem:[#allocation2 + $0xb1] sm:$0xff]
    %v316 = vld [vmem:[#allocation2 + $0xc9] sm:$0xff]
    %v317 = vld [vmem:[#allocation2 + $0xd1] sm:$0xff]
    %v318 = vld [vmem:[#allocation2 + $0xe9] sm:$0xff]
    %v319 = vld [vmem:[#allocation2 + $0xf1] sm:$0xff]
    %v320 = vld [vmem:[#allocation3 + $0x2] sm:$0x1]
    %v321 = vlaneseq
    %v322 = vshrl.u32 %v321, 7
    %v323 = vsub.s32 0, %v322
    %v324 = vrot.slane %v320, %v323
    %v325 = vmul.f32 %v304, %v324
    %v326 = vmul.f32 %v305, %v324
    %v327 = vmul.f32 %v306, %v324
    %v328 = vmul.f32 %v307, %v324
    %v329 = vmul.f32 %v308, %v324
    %v330 = vmul.f32 %v309, %v324
    %v331 = vmul.f32 %v310, %v324
    %v332 = vmul.f32 %v311, %v324
    %v333 = vmul.f32 %v312, %v324
    %v334 = vmul.f32 %v313, %v324
    %v335 = vmul.f32 %v314, %v324
    %v336 = vmul.f32 %v315, %v324
    %v337 = vmul.f32 %v316, %v324
    %v338 = vmul.f32 %v317, %v324
    %v339 = vmul.f32 %v318, %v324
    %v340 = vmul.f32 %v319, %v324
    %v341 = vadd.f32 %v288, %v325
    %v342 = vadd.f32 %v289, %v326
    %v343 = vadd.f32 %v290, %v327
    %v344 = vadd.f32 %v291, %v328
    %v345 = vadd.f32 %v292, %v329
    %v346 = vadd.f32 %v293, %v330
    %v347 = vadd.f32 %v294, %v331
    %v348 = vadd.f32 %v295, %v332
    %v349 = vadd.f32 %v296, %v333
    %v350 = vadd.f32 %v297, %v334
    %v351 = vadd.f32 %v298, %v335
    %v352 = vadd.f32 %v299, %v336
    %v353 = vadd.f32 %v300, %v337
    %v354 = vadd.f32 %v301, %v338
    %v355 = vadd.f32 %v302, %v339
    %v356 = vadd.f32 %v303, %v340
    %v357 = vld [vmem:[%s75 + $0x7] sm:$0xff]
    %v358 = vld [vmem:[%s75 + $0xf] sm:$0xff]
    %v359 = vld [vmem:[%s75 + $0x27] sm:$0xff]
    %v360 = vld [vmem:[%s75 + $0x2f] sm:$0xff]
    %v361 = vld [vmem:[%s75 + $0x47] sm:$0xff]
    %v362 = vld [vmem:[%s75 + $0x4f] sm:$0xff]
    %v363 = vld [vmem:[%s75 + $0x67] sm:$0xff]
    %v364 = vld [vmem:[%s75 + $0x6f] sm:$0xff]
    %v365 = vld [vmem:[%s75 + $0x87] sm:$0xff]
    %v366 = vld [vmem:[%s75 + $0x8f] sm:$0xff]
    %v367 = vld [vmem:[%s75 + $0xa7] sm:$0xff]
    %v368 = vld [vmem:[%s75 + $0xaf] sm:$0xff]
    %v369 = vld [vmem:[%s75 + $0xc7] sm:$0xff]
    %v370 = vld [vmem:[%s75 + $0xcf] sm:$0xff]
    %v371 = vld [vmem:[%s75 + $0xe7] sm:$0xff]
    %v372 = vld [vmem:[%s75 + $0xef] sm:$0xff]
    %v373 = vld [vmem:[#allocation3 + $0x3] sm:$0x1]
    %v374 = vlaneseq
    %v375 = vshrl.u32 %v374, 7
    %v376 = vsub.s32 0, %v375
    %v377 = vrot.slane %v373, %v376
    %v378 = vmul.f32 %v357, %v377
    %v379 = vmul.f32 %v358, %v377
    %v380 = vmul.f32 %v359, %v377
    %v381 = vmul.f32 %v360, %v377
    %v382 = vmul.f32 %v361, %v377
    %v383 = vmul.f32 %v362, %v377
    %v384 = vmul.f32 %v363, %v377
    %v385 = vmul.f32 %v364, %v377
    %v386 = vmul.f32 %v365, %v377
    %v387 = vmul.f32 %v366, %v377
    %v388 = vmul.f32 %v367, %v377
    %v389 = vmul.f32 %v368, %v377
    %v390 = vmul.f32 %v369, %v377
    %v391 = vmul.f32 %v370, %v377
    %v392 = vmul.f32 %v371, %v377
    %v393 = vmul.f32 %v372, %v377
    %v394 = vadd.f32 %v341, %v378
    %v395 = vadd.f32 %v342, %v379
    %v396 = vadd.f32 %v343, %v380
    %v397 = vadd.f32 %v344, %v381
    %v398 = vadd.f32 %v345, %v382
    %v399 = vadd.f32 %v346, %v383
    %v400 = vadd.f32 %v347, %v384
    %v401 = vadd.f32 %v348, %v385
    %v402 = vadd.f32 %v349, %v386
    %v403 = vadd.f32 %v350, %v387
    %v404 = vadd.f32 %v351, %v388
    %v405 = vadd.f32 %v352, %v389
    %v406 = vadd.f32 %v353, %v390
    %v407 = vadd.f32 %v354, %v391
    %v408 = vadd.f32 %v355, %v392
    %v409 = vadd.f32 %v356, %v393
    %v410 = vld [vmem:[%s75 + $0x8] sm:$0xff]
    %v411 = vld [vmem:[%s75 + $0x10] sm:$0xff]
    %v412 = vld [vmem:[%s75 + $0x28] sm:$0xff]
    %v413 = vld [vmem:[%s75 + $0x30] sm:$0xff]
    %v414 = vld [vmem:[%s75 + $0x48] sm:$0xff]
    %v415 = vld [vmem:[%s75 + $0x50] sm:$0xff]
    %v416 = vld [vmem:[%s75 + $0x68] sm:$0xff]
    %v417 = vld [vmem:[%s75 + $0x70] sm:$0xff]
    %v418 = vld [vmem:[%s75 + $0x88] sm:$0xff]
    %v419 = vld [vmem:[%s75 + $0x90] sm:$0xff]
    %v420 = vld [vmem:[%s75 + $0xa8] sm:$0xff]
    %v421 = vld [vmem:[%s75 + $0xb0] sm:$0xff]
    %v422 = vld [vmem:[%s75 + $0xc8] sm:$0xff]
    %v423 = vld [vmem:[%s75 + $0xd0] sm:$0xff]
    %v424 = vld [vmem:[%s75 + $0xe8] sm:$0xff]
    %v425 = vld [vmem:[%s75 + $0xf0] sm:$0xff]
    %v426 = vld [vmem:[#allocation3 + $0x4] sm:$0x1]
    %v427 = vlaneseq
    %v428 = vshrl.u32 %v427, 7
    %v429 = vsub.s32 0, %v428
    %v430 = vrot.slane %v426, %v429
    %v431 = vmul.f32 %v410, %v430
    %v432 = vmul.f32 %v411, %v430
    %v433 = vmul.f32 %v412, %v430
    %v434 = vmul.f32 %v413, %v430
    %v435 = vmul.f32 %v414, %v430
    %v436 = vmul.f32 %v415, %v430
    %v437 = vmul.f32 %v416, %v430
    %v438 = vmul.f32 %v417, %v430
    %v439 = vmul.f32 %v418, %v430
    %v440 = vmul.f32 %v419, %v430
    %v441 = vmul.f32 %v420, %v430
    %v442 = vmul.f32 %v421, %v430
    %v443 = vmul.f32 %v422, %v430
    %v444 = vmul.f32 %v423, %v430
    %v445 = vmul.f32 %v424, %v430
    %v446 = vmul.f32 %v425, %v430
    %v447 = vadd.f32 %v394, %v431
    %v448 = vadd.f32 %v395, %v432
    %v449 = vadd.f32 %v396, %v433
    %v450 = vadd.f32 %v397, %v434
    %v451 = vadd.f32 %v398, %v435
    %v452 = vadd.f32 %v399, %v436
    %v453 = vadd.f32 %v400, %v437
    %v454 = vadd.f32 %v401, %v438
    %v455 = vadd.f32 %v402, %v439
    %v456 = vadd.f32 %v403, %v440
    %v457 = vadd.f32 %v404, %v441
    %v458 = vadd.f32 %v405, %v442
    %v459 = vadd.f32 %v406, %v443
    %v460 = vadd.f32 %v407, %v444
    %v461 = vadd.f32 %v408, %v445
    %v462 = vadd.f32 %v409, %v446
    %v463 = vld [vmem:[%s75 + $0x9] sm:$0xff]
    %v464 = vld [vmem:[%s75 + $0x11] sm:$0xff]
    %v465 = vld [vmem:[%s75 + $0x29] sm:$0xff]
    %v466 = vld [vmem:[%s75 + $0x31] sm:$0xff]
    %v467 = vld [vmem:[%s75 + $0x49] sm:$0xff]
    %v468 = vld [vmem:[%s75 + $0x51] sm:$0xff]
    %v469 = vld [vmem:[%s75 + $0x69] sm:$0xff]
    %v470 = vld [vmem:[%s75 + $0x71] sm:$0xff]
    %v471 = vld [vmem:[%s75 + $0x89] sm:$0xff]
    %v472 = vld [vmem:[%s75 + $0x91] sm:$0xff]
    %v473 = vld [vmem:[%s75 + $0xa9] sm:$0xff]
    %v474 = vld [vmem:[%s75 + $0xb1] sm:$0xff]
    %v475 = vld [vmem:[%s75 + $0xc9] sm:$0xff]
    %v476 = vld [vmem:[%s75 + $0xd1] sm:$0xff]
    %v477 = vld [vmem:[%s75 + $0xe9] sm:$0xff]
    %v478 = vld [vmem:[%s75 + $0xf1] sm:$0xff]
    %v479 = vld [vmem:[#allocation3 + $0x5] sm:$0x1]
    %v480 = vlaneseq
    %v481 = vshrl.u32 %v480, 7
    %v482 = vsub.s32 0, %v481
    %v483 = vrot.slane %v479, %v482
    %v484 = vmul.f32 %v463, %v483
    %v485 = vmul.f32 %v464, %v483
    %v486 = vmul.f32 %v465, %v483
    %v487 = vmul.f32 %v466, %v483
    %v488 = vmul.f32 %v467, %v483
    %v489 = vmul.f32 %v468, %v483
    %v490 = vmul.f32 %v469, %v483
    %v491 = vmul.f32 %v470, %v483
    %v492 = vmul.f32 %v471, %v483
    %v493 = vmul.f32 %v472, %v483
    %v494 = vmul.f32 %v473, %v483
    %v495 = vmul.f32 %v474, %v483
    %v496 = vmul.f32 %v475, %v483
    %v497 = vmul.f32 %v476, %v483
    %v498 = vmul.f32 %v477, %v483
    %v499 = vmul.f32 %v478, %v483
    %v500 = vadd.f32 %v447, %v484
    %v501 = vadd.f32 %v448, %v485
    %v502 = vadd.f32 %v449, %v486
    %v503 = vadd.f32 %v450, %v487
    %v504 = vadd.f32 %v451, %v488
    %v505 = vadd.f32 %v452, %v489
    %v506 = vadd.f32 %v453, %v490
    %v507 = vadd.f32 %v454, %v491
    %v508 = vadd.f32 %v455, %v492
    %v509 = vadd.f32 %v456, %v493
    %v510 = vadd.f32 %v457, %v494
    %v511 = vadd.f32 %v458, %v495
    %v512 = vadd.f32 %v459, %v496
    %v513 = vadd.f32 %v460, %v497
    %v514 = vadd.f32 %v461, %v498
    %v515 = vadd.f32 %v462, %v499
    %s516 = scalar_lea.vmem [#allocation2], 64
    %v517 = vld [vmem:[%s516 + $0x7] sm:$0xff]
    %v518 = vld [vmem:[%s516 + $0xf] sm:$0xff]
    %v519 = vld [vmem:[%s516 + $0x27] sm:$0xff]
    %v520 = vld [vmem:[%s516 + $0x2f] sm:$0xff]
    %v521 = vld [vmem:[%s516 + $0x47] sm:$0xff]
    %v522 = vld [vmem:[%s516 + $0x4f] sm:$0xff]
    %v523 = vld [vmem:[%s516 + $0x67] sm:$0xff]
    %v524 = vld [vmem:[%s516 + $0x6f] sm:$0xff]
    %v525 = vld [vmem:[%s516 + $0x87] sm:$0xff]
    %v526 = vld [vmem:[%s516 + $0x8f] sm:$0xff]
    %v527 = vld [vmem:[%s516 + $0xa7] sm:$0xff]
    %v528 = vld [vmem:[%s516 + $0xaf] sm:$0xff]
    %v529 = vld [vmem:[%s516 + $0xc7] sm:$0xff]
    %v530 = vld [vmem:[%s516 + $0xcf] sm:$0xff]
    %v531 = vld [vmem:[%s516 + $0xe7] sm:$0xff]
    %v532 = vld [vmem:[%s516 + $0xef] sm:$0xff]
    %v533 = vld [vmem:[#allocation3 + $0x6] sm:$0x1]
    %v534 = vlaneseq
    %v535 = vshrl.u32 %v534, 7
    %v536 = vsub.s32 0, %v535
    %v537 = vrot.slane %v533, %v536
    %v538 = vmul.f32 %v517, %v537
    %v539 = vmul.f32 %v518, %v537
    %v540 = vmul.f32 %v519, %v537
    %v541 = vmul.f32 %v520, %v537
    %v542 = vmul.f32 %v521, %v537
    %v543 = vmul.f32 %v522, %v537
    %v544 = vmul.f32 %v523, %v537
    %v545 = vmul.f32 %v524, %v537
    %v546 = vmul.f32 %v525, %v537
    %v547 = vmul.f32 %v526, %v537
    %v548 = vmul.f32 %v527, %v537
    %v549 = vmul.f32 %v528, %v537
    %v550 = vmul.f32 %v529, %v537
    %v551 = vmul.f32 %v530, %v537
    %v552 = vmul.f32 %v531, %v537
    %v553 = vmul.f32 %v532, %v537
    %v554 = vadd.f32 %v500, %v538
    %v555 = vadd.f32 %v501, %v539
    %v556 = vadd.f32 %v502, %v540
    %v557 = vadd.f32 %v503, %v541
    %v558 = vadd.f32 %v504, %v542
    %v559 = vadd.f32 %v505, %v543
    %v560 = vadd.f32 %v506, %v544
    %v561 = vadd.f32 %v507, %v545
    %v562 = vadd.f32 %v508, %v546
    %v563 = vadd.f32 %v509, %v547
    %v564 = vadd.f32 %v510, %v548
    %v565 = vadd.f32 %v511, %v549
    %v566 = vadd.f32 %v512, %v550
    %v567 = vadd.f32 %v513, %v551
    %v568 = vadd.f32 %v514, %v552
    %v569 = vadd.f32 %v515, %v553
    %v570 = vld [vmem:[%s516 + $0x8] sm:$0xff]
    %v571 = vld [vmem:[%s516 + $0x10] sm:$0xff]
    %v572 = vld [vmem:[%s516 + $0x28] sm:$0xff]
    %v573 = vld [vmem:[%s516 + $0x30] sm:$0xff]
    %v574 = vld [vmem:[%s516 + $0x48] sm:$0xff]
    %v575 = vld [vmem:[%s516 + $0x50] sm:$0xff]
    %v576 = vld [vmem:[%s516 + $0x68] sm:$0xff]
    %v577 = vld [vmem:[%s516 + $0x70] sm:$0xff]
    %v578 = vld [vmem:[%s516 + $0x88] sm:$0xff]
    %v579 = vld [vmem:[%s516 + $0x90] sm:$0xff]
    %v580 = vld [vmem:[%s516 + $0xa8] sm:$0xff]
    %v581 = vld [vmem:[%s516 + $0xb0] sm:$0xff]
    %v582 = vld [vmem:[%s516 + $0xc8] sm:$0xff]
    %v583 = vld [vmem:[%s516 + $0xd0] sm:$0xff]
    %v584 = vld [vmem:[%s516 + $0xe8] sm:$0xff]
    %v585 = vld [vmem:[%s516 + $0xf0] sm:$0xff]
    %v586 = vld [vmem:[#allocation3 + $0x7] sm:$0x1]
    %v587 = vlaneseq
    %v588 = vshrl.u32 %v587, 7
    %v589 = vsub.s32 0, %v588
    %v590 = vrot.slane %v586, %v589
    %v591 = vmul.f32 %v570, %v590
    %v592 = vmul.f32 %v571, %v590
    %v593 = vmul.f32 %v572, %v590
    %v594 = vmul.f32 %v573, %v590
    %v595 = vmul.f32 %v574, %v590
    %v596 = vmul.f32 %v575, %v590
    %v597 = vmul.f32 %v576, %v590
    %v598 = vmul.f32 %v577, %v590
    %v599 = vmul.f32 %v578, %v590
    %v600 = vmul.f32 %v579, %v590
    %v601 = vmul.f32 %v580, %v590
    %v602 = vmul.f32 %v581, %v590
    %v603 = vmul.f32 %v582, %v590
    %v604 = vmul.f32 %v583, %v590
    %v605 = vmul.f32 %v584, %v590
    %v606 = vmul.f32 %v585, %v590
    %v607 = vadd.f32 %v554, %v591
    %v608 = vadd.f32 %v555, %v592
    %v609 = vadd.f32 %v556, %v593
    %v610 = vadd.f32 %v557, %v594
    %v611 = vadd.f32 %v558, %v595
    %v612 = vadd.f32 %v559, %v596
    %v613 = vadd.f32 %v560, %v597
    %v614 = vadd.f32 %v561, %v598
    %v615 = vadd.f32 %v562, %v599
    %v616 = vadd.f32 %v563, %v600
    %v617 = vadd.f32 %v564, %v601
    %v618 = vadd.f32 %v565, %v602
    %v619 = vadd.f32 %v566, %v603
    %v620 = vadd.f32 %v567, %v604
    %v621 = vadd.f32 %v568, %v605
    %v622 = vadd.f32 %v569, %v606
    %v623 = vld [vmem:[%s516 + $0x9] sm:$0xff]
    %v624 = vld [vmem:[%s516 + $0x11] sm:$0xff]
    %v625 = vld [vmem:[%s516 + $0x29] sm:$0xff]
    %v626 = vld [vmem:[%s516 + $0x31] sm:$0xff]
    %v627 = vld [vmem:[%s516 + $0x49] sm:$0xff]
    %v628 = vld [vmem:[%s516 + $0x51] sm:$0xff]
    %v629 = vld [vmem:[%s516 + $0x69] sm:$0xff]
    %v630 = vld [vmem:[%s516 + $0x71] sm:$0xff]
    %v631 = vld [vmem:[%s516 + $0x89] sm:$0xff]
    %v632 = vld [vmem:[%s516 + $0x91] sm:$0xff]
    %v633 = vld [vmem:[%s516 + $0xa9] sm:$0xff]
    %v634 = vld [vmem:[%s516 + $0xb1] sm:$0xff]
    %v635 = vld [vmem:[%s516 + $0xc9] sm:$0xff]
    %v636 = vld [vmem:[%s516 + $0xd1] sm:$0xff]
    %v637 = vld [vmem:[%s516 + $0xe9] sm:$0xff]
    %v638 = vld [vmem:[%s516 + $0xf1] sm:$0xff]
    %v639 = vld [vmem:[#allocation3 + $0x8] sm:$0x1]
    %v640 = vlaneseq
    %v641 = vshrl.u32 %v640, 7
    %v642 = vsub.s32 0, %v641
    %v643 = vrot.slane %v639, %v642
    %v644 = vmul.f32 %v623, %v643
    %v645 = vmul.f32 %v624, %v643
    %v646 = vmul.f32 %v625, %v643
    %v647 = vmul.f32 %v626, %v643
    %v648 = vmul.f32 %v627, %v643
    %v649 = vmul.f32 %v628, %v643
    %v650 = vmul.f32 %v629, %v643
    %v651 = vmul.f32 %v630, %v643
    %v652 = vmul.f32 %v631, %v643
    %v653 = vmul.f32 %v632, %v643
    %v654 = vmul.f32 %v633, %v643
    %v655 = vmul.f32 %v634, %v643
    %v656 = vmul.f32 %v635, %v643
    %v657 = vmul.f32 %v636, %v643
    %v658 = vmul.f32 %v637, %v643
    %v659 = vmul.f32 %v638, %v643
    %v660 = vadd.f32 %v607, %v644
    %v661 = vadd.f32 %v608, %v645
    %v662 = vadd.f32 %v609, %v646
    %v663 = vadd.f32 %v610, %v647
    %v664 = vadd.f32 %v611, %v648
    %v665 = vadd.f32 %v612, %v649
    %v666 = vadd.f32 %v613, %v650
    %v667 = vadd.f32 %v614, %v651
    %v668 = vadd.f32 %v615, %v652
    %v669 = vadd.f32 %v616, %v653
    %v670 = vadd.f32 %v617, %v654
    %v671 = vadd.f32 %v618, %v655
    %v672 = vadd.f32 %v619, %v656
    %v673 = vadd.f32 %v620, %v657
    %v674 = vadd.f32 %v621, %v658
    %v675 = vadd.f32 %v622, %v659
    %676 = vst [vmem:[#allocation8] sm:$0xff] %v660
    %677 = vst [vmem:[#allocation8 + $0x8] sm:$0xff] %v661
    %678 = vst [vmem:[#allocation8 + $0x10] sm:$0xff] %v662
    %679 = vst [vmem:[#allocation8 + $0x18] sm:$0xff] %v663
    %680 = vst [vmem:[#allocation8 + $0x20] sm:$0xff] %v664
    %681 = vst [vmem:[#allocation8 + $0x28] sm:$0xff] %v665
    %682 = vst [vmem:[#allocation8 + $0x30] sm:$0xff] %v666
    %683 = vst [vmem:[#allocation8 + $0x38] sm:$0xff] %v667
    %684 = vst [vmem:[#allocation8 + $0x40] sm:$0xff] %v668
    %685 = vst [vmem:[#allocation8 + $0x48] sm:$0xff] %v669
    %686 = vst [vmem:[#allocation8 + $0x50] sm:$0xff] %v670
    %687 = vst [vmem:[#allocation8 + $0x58] sm:$0xff] %v671
    %688 = vst [vmem:[#allocation8 + $0x60] sm:$0xff] %v672
    %689 = vst [vmem:[#allocation8 + $0x68] sm:$0xff] %v673
    %690 = vst [vmem:[#allocation8 + $0x70] sm:$0xff] %v674
    %691 = vst [vmem:[#allocation8 + $0x78] sm:$0xff] %v675
    %s692 = scalar_lea.vmem [#allocation2], 256
    %v693 = vld [vmem:[%s692 + $0x7] sm:$0xff]
    %v694 = vld [vmem:[%s692 + $0xf] sm:$0xff]
    %v695 = vld [vmem:[%s692 + $0x27] sm:$0xff]
    %v696 = vld [vmem:[%s692 + $0x2f] sm:$0xff]
    %v697 = vld [vmem:[%s692 + $0x47] sm:$0xff]
    %v698 = vld [vmem:[%s692 + $0x4f] sm:$0xff]
    %v699 = vld [vmem:[%s692 + $0x67] sm:$0xff]
    %v700 = vld [vmem:[%s692 + $0x6f] sm:$0xff]
    %v701 = vld [vmem:[%s692 + $0x87] sm:$0xff]
    %v702 = vld [vmem:[%s692 + $0x8f] sm:$0xff]
    %v703 = vld [vmem:[%s692 + $0xa7] sm:$0xff]
    %v704 = vld [vmem:[%s692 + $0xaf] sm:$0xff]
    %v705 = vld [vmem:[%s692 + $0xc7] sm:$0xff]
    %v706 = vld [vmem:[%s692 + $0xcf] sm:$0xff]
    %v707 = vld [vmem:[%s692 + $0xe7] sm:$0xff]
    %v708 = vld [vmem:[%s692 + $0xef] sm:$0xff]
    %v709 = vld [vmem:[#allocation3] sm:$0x1]
    %v710 = vlaneseq
    %v711 = vshrl.u32 %v710, 7
    %v712 = vsub.s32 0, %v711
    %v713 = vrot.slane %v709, %v712
    %v714 = vmul.f32 %v693, %v713
    %v715 = vmul.f32 %v694, %v713
    %v716 = vmul.f32 %v695, %v713
    %v717 = vmul.f32 %v696, %v713
    %v718 = vmul.f32 %v697, %v713
    %v719 = vmul.f32 %v698, %v713
    %v720 = vmul.f32 %v699, %v713
    %v721 = vmul.f32 %v700, %v713
    %v722 = vmul.f32 %v701, %v713
    %v723 = vmul.f32 %v702, %v713
    %v724 = vmul.f32 %v703, %v713
    %v725 = vmul.f32 %v704, %v713
    %v726 = vmul.f32 %v705, %v713
    %v727 = vmul.f32 %v706, %v713
    %v728 = vmul.f32 %v707, %v713
    %v729 = vmul.f32 %v708, %v713
    %v730 = vadd.f32 %v196, %v714
    %v731 = vadd.f32 %v196, %v715
    %v732 = vadd.f32 %v196, %v716
    %v733 = vadd.f32 %v196, %v717
    %v734 = vadd.f32 %v196, %v718
    %v735 = vadd.f32 %v196, %v719
    %v736 = vadd.f32 %v196, %v720
    %v737 = vadd.f32 %v196, %v721
    %v738 = vadd.f32 %v196, %v722
    %v739 = vadd.f32 %v196, %v723
    %v740 = vadd.f32 %v196, %v724
    %v741 = vadd.f32 %v196, %v725
    %v742 = vadd.f32 %v196, %v726
    %v743 = vadd.f32 %v196, %v727
    %v744 = vadd.f32 %v196, %v728
    %v745 = vadd.f32 %v196, %v729
    %v746 = vld [vmem:[%s692 + $0x8] sm:$0xff]
    %v747 = vld [vmem:[%s692 + $0x10] sm:$0xff]
    %v748 = vld [vmem:[%s692 + $0x28] sm:$0xff]
    %v749 = vld [vmem:[%s692 + $0x30] sm:$0xff]
    %v750 = vld [vmem:[%s692 + $0x48] sm:$0xff]
    %v751 = vld [vmem:[%s692 + $0x50] sm:$0xff]
    %v752 = vld [vmem:[%s692 + $0x68] sm:$0xff]
    %v753 = vld [vmem:[%s692 + $0x70] sm:$0xff]
    %v754 = vld [vmem:[%s692 + $0x88] sm:$0xff]
    %v755 = vld [vmem:[%s692 + $0x90] sm:$0xff]
    %v756 = vld [vmem:[%s692 + $0xa8] sm:$0xff]
    %v757 = vld [vmem:[%s692 + $0xb0] sm:$0xff]
    %v758 = vld [vmem:[%s692 + $0xc8] sm:$0xff]
    %v759 = vld [vmem:[%s692 + $0xd0] sm:$0xff]
    %v760 = vld [vmem:[%s692 + $0xe8] sm:$0xff]
    %v761 = vld [vmem:[%s692 + $0xf0] sm:$0xff]
    %v762 = vld [vmem:[#allocation3 + $0x1] sm:$0x1]
    %v763 = vlaneseq
    %v764 = vshrl.u32 %v763, 7
    %v765 = vsub.s32 0, %v764
    %v766 = vrot.slane %v762, %v765
    %v767 = vmul.f32 %v746, %v766
    %v768 = vmul.f32 %v747, %v766
    %v769 = vmul.f32 %v748, %v766
    %v770 = vmul.f32 %v749, %v766
    %v771 = vmul.f32 %v750, %v766
    %v772 = vmul.f32 %v751, %v766
    %v773 = vmul.f32 %v752, %v766
    %v774 = vmul.f32 %v753, %v766
    %v775 = vmul.f32 %v754, %v766
    %v776 = vmul.f32 %v755, %v766
    %v777 = vmul.f32 %v756, %v766
    %v778 = vmul.f32 %v757, %v766
    %v779 = vmul.f32 %v758, %v766
    %v780 = vmul.f32 %v759, %v766
    %v781 = vmul.f32 %v760, %v766
    %v782 = vmul.f32 %v761, %v766
    %v783 = vadd.f32 %v730, %v767
    %v784 = vadd.f32 %v731, %v768
    %v785 = vadd.f32 %v732, %v769
    %v786 = vadd.f32 %v733, %v770
    %v787 = vadd.f32 %v734, %v771
    %v788 = vadd.f32 %v735, %v772
    %v789 = vadd.f32 %v736, %v773
    %v790 = vadd.f32 %v737, %v774
    %v791 = vadd.f32 %v738, %v775
    %v792 = vadd.f32 %v739, %v776
    %v793 = vadd.f32 %v740, %v777
    %v794 = vadd.f32 %v741, %v778
    %v795 = vadd.f32 %v742, %v779
    %v796 = vadd.f32 %v743, %v780
    %v797 = vadd.f32 %v744, %v781
    %v798 = vadd.f32 %v745, %v782
    %v799 = vld [vmem:[%s692 + $0x9] sm:$0xff]
    %v800 = vld [vmem:[%s692 + $0x11] sm:$0xff]
    %v801 = vld [vmem:[%s692 + $0x29] sm:$0xff]
    %v802 = vld [vmem:[%s692 + $0x31] sm:$0xff]
    %v803 = vld [vmem:[%s692 + $0x49] sm:$0xff]
    %v804 = vld [vmem:[%s692 + $0x51] sm:$0xff]
    %v805 = vld [vmem:[%s692 + $0x69] sm:$0xff]
    %v806 = vld [vmem:[%s692 + $0x71] sm:$0xff]
    %v807 = vld [vmem:[%s692 + $0x89] sm:$0xff]
    %v808 = vld [vmem:[%s692 + $0x91] sm:$0xff]
    %v809 = vld [vmem:[%s692 + $0xa9] sm:$0xff]
    %v810 = vld [vmem:[%s692 + $0xb1] sm:$0xff]
    %v811 = vld [vmem:[%s692 + $0xc9] sm:$0xff]
    %v812 = vld [vmem:[%s692 + $0xd1] sm:$0xff]
    %v813 = vld [vmem:[%s692 + $0xe9] sm:$0xff]
    %v814 = vld [vmem:[%s692 + $0xf1] sm:$0xff]
    %v815 = vld [vmem:[#allocation3 + $0x2] sm:$0x1]
    %v816 = vlaneseq
    %v817 = vshrl.u32 %v816, 7
    %v818 = vsub.s32 0, %v817
    %v819 = vrot.slane %v815, %v818
    %v820 = vmul.f32 %v799, %v819
    %v821 = vmul.f32 %v800, %v819
    %v822 = vmul.f32 %v801, %v819
    %v823 = vmul.f32 %v802, %v819
    %v824 = vmul.f32 %v803, %v819
    %v825 = vmul.f32 %v804, %v819
    %v826 = vmul.f32 %v805, %v819
    %v827 = vmul.f32 %v806, %v819
    %v828 = vmul.f32 %v807, %v819
    %v829 = vmul.f32 %v808, %v819
    %v830 = vmul.f32 %v809, %v819
    %v831 = vmul.f32 %v810, %v819
    %v832 = vmul.f32 %v811, %v819
    %v833 = vmul.f32 %v812, %v819
    %v834 = vmul.f32 %v813, %v819
    %v835 = vmul.f32 %v814, %v819
    %v836 = vadd.f32 %v783, %v820
    %v837 = vadd.f32 %v784, %v821
    %v838 = vadd.f32 %v785, %v822
    %v839 = vadd.f32 %v786, %v823
    %v840 = vadd.f32 %v787, %v824
    %v841 = vadd.f32 %v788, %v825
    %v842 = vadd.f32 %v789, %v826
    %v843 = vadd.f32 %v790, %v827
    %v844 = vadd.f32 %v791, %v828
    %v845 = vadd.f32 %v792, %v829
    %v846 = vadd.f32 %v793, %v830
    %v847 = vadd.f32 %v794, %v831
    %v848 = vadd.f32 %v795, %v832
    %v849 = vadd.f32 %v796, %v833
    %v850 = vadd.f32 %v797, %v834
    %v851 = vadd.f32 %v798, %v835
    %s852 = scalar_lea.vmem [#allocation2], 288
    %v853 = vld [vmem:[%s852 + $0x7] sm:$0xff]
    %v854 = vld [vmem:[%s852 + $0xf] sm:$0xff]
    %v855 = vld [vmem:[%s852 + $0x27] sm:$0xff]
    %v856 = vld [vmem:[%s852 + $0x2f] sm:$0xff]
    %v857 = vld [vmem:[%s852 + $0x47] sm:$0xff]
    %v858 = vld [vmem:[%s852 + $0x4f] sm:$0xff]
    %v859 = vld [vmem:[%s852 + $0x67] sm:$0xff]
    %v860 = vld [vmem:[%s852 + $0x6f] sm:$0xff]
    %v861 = vld [vmem:[%s852 + $0x87] sm:$0xff]
    %v862 = vld [vmem:[%s852 + $0x8f] sm:$0xff]
    %v863 = vld [vmem:[%s852 + $0xa7] sm:$0xff]
    %v864 = vld [vmem:[%s852 + $0xaf] sm:$0xff]
    %v865 = vld [vmem:[%s852 + $0xc7] sm:$0xff]
    %v866 = vld [vmem:[%s852 + $0xcf] sm:$0xff]
    %v867 = vld [vmem:[%s852 + $0xe7] sm:$0xff]
    %v868 = vld [vmem:[%s852 + $0xef] sm:$0xff]
    %v869 = vld [vmem:[#allocation3 + $0x3] sm:$0x1]
    %v870 = vlaneseq
    %v871 = vshrl.u32 %v870, 7
    %v872 = vsub.s32 0, %v871
    %v873 = vrot.slane %v869, %v872
    %v874 = vmul.f32 %v853, %v873
    %v875 = vmul.f32 %v854, %v873
    %v876 = vmul.f32 %v855, %v873
    %v877 = vmul.f32 %v856, %v873
    %v878 = vmul.f32 %v857, %v873
    %v879 = vmul.f32 %v858, %v873
    %v880 = vmul.f32 %v859, %v873
    %v881 = vmul.f32 %v860, %v873
    %v882 = vmul.f32 %v861, %v873
    %v883 = vmul.f32 %v862, %v873
    %v884 = vmul.f32 %v863, %v873
    %v885 = vmul.f32 %v864, %v873
    %v886 = vmul.f32 %v865, %v873
    %v887 = vmul.f32 %v866, %v873
    %v888 = vmul.f32 %v867, %v873
    %v889 = vmul.f32 %v868, %v873
    %v890 = vadd.f32 %v836, %v874
    %v891 = vadd.f32 %v837, %v875
    %v892 = vadd.f32 %v838, %v876
    %v893 = vadd.f32 %v839, %v877
    %v894 = vadd.f32 %v840, %v878
    %v895 = vadd.f32 %v841, %v879
    %v896 = vadd.f32 %v842, %v880
    %v897 = vadd.f32 %v843, %v881
    %v898 = vadd.f32 %v844, %v882
    %v899 = vadd.f32 %v845, %v883
    %v900 = vadd.f32 %v846, %v884
    %v901 = vadd.f32 %v847, %v885
    %v902 = vadd.f32 %v848, %v886
    %v903 = vadd.f32 %v849, %v887
    %v904 = vadd.f32 %v850, %v888
    %v905 = vadd.f32 %v851, %v889
    %v906 = vld [vmem:[%s852 + $0x8] sm:$0xff]
    %v907 = vld [vmem:[%s852 + $0x10] sm:$0xff]
    %v908 = vld [vmem:[%s852 + $0x28] sm:$0xff]
    %v909 = vld [vmem:[%s852 + $0x30] sm:$0xff]
    %v910 = vld [vmem:[%s852 + $0x48] sm:$0xff]
    %v911 = vld [vmem:[%s852 + $0x50] sm:$0xff]
    %v912 = vld [vmem:[%s852 + $0x68] sm:$0xff]
    %v913 = vld [vmem:[%s852 + $0x70] sm:$0xff]
    %v914 = vld [vmem:[%s852 + $0x88] sm:$0xff]
    %v915 = vld [vmem:[%s852 + $0x90] sm:$0xff]
    %v916 = vld [vmem:[%s852 + $0xa8] sm:$0xff]
    %v917 = vld [vmem:[%s852 + $0xb0] sm:$0xff]
    %v918 = vld [vmem:[%s852 + $0xc8] sm:$0xff]
    %v919 = vld [vmem:[%s852 + $0xd0] sm:$0xff]
    %v920 = vld [vmem:[%s852 + $0xe8] sm:$0xff]
    %v921 = vld [vmem:[%s852 + $0xf0] sm:$0xff]
    %v922 = vld [vmem:[#allocation3 + $0x4] sm:$0x1]
    %v923 = vlaneseq
    %v924 = vshrl.u32 %v923, 7
    %v925 = vsub.s32 0, %v924
    %v926 = vrot.slane %v922, %v925
    %v927 = vmul.f32 %v906, %v926
    %v928 = vmul.f32 %v907, %v926
    %v929 = vmul.f32 %v908, %v926
    %v930 = vmul.f32 %v909, %v926
    %v931 = vmul.f32 %v910, %v926
    %v932 = vmul.f32 %v911, %v926
    %v933 = vmul.f32 %v912, %v926
    %v934 = vmul.f32 %v913, %v926
    %v935 = vmul.f32 %v914, %v926
    %v936 = vmul.f32 %v915, %v926
    %v937 = vmul.f32 %v916, %v926
    %v938 = vmul.f32 %v917, %v926
    %v939 = vmul.f32 %v918, %v926
    %v940 = vmul.f32 %v919, %v926
    %v941 = vmul.f32 %v920, %v926
    %v942 = vmul.f32 %v921, %v926
    %v943 = vadd.f32 %v890, %v927
    %v944 = vadd.f32 %v891, %v928
    %v945 = vadd.f32 %v892, %v929
    %v946 = vadd.f32 %v893, %v930
    %v947 = vadd.f32 %v894, %v931
    %v948 = vadd.f32 %v895, %v932
    %v949 = vadd.f32 %v896, %v933
    %v950 = vadd.f32 %v897, %v934
    %v951 = vadd.f32 %v898, %v935
    %v952 = vadd.f32 %v899, %v936
    %v953 = vadd.f32 %v900, %v937
    %v954 = vadd.f32 %v901, %v938
    %v955 = vadd.f32 %v902, %v939
    %v956 = vadd.f32 %v903, %v940
    %v957 = vadd.f32 %v904, %v941
    %v958 = vadd.f32 %v905, %v942
    %v959 = vld [vmem:[%s852 + $0x9] sm:$0xff]
    %v960 = vld [vmem:[%s852 + $0x11] sm:$0xff]
    %v961 = vld [vmem:[%s852 + $0x29] sm:$0xff]
    %v962 = vld [vmem:[%s852 + $0x31] sm:$0xff]
    %v963 = vld [vmem:[%s852 + $0x49] sm:$0xff]
    %v964 = vld [vmem:[%s852 + $0x51] sm:$0xff]
    %v965 = vld [vmem:[%s852 + $0x69] sm:$0xff]
    %v966 = vld [vmem:[%s852 + $0x71] sm:$0xff]
    %v967 = vld [vmem:[%s852 + $0x89] sm:$0xff]
    %v968 = vld [vmem:[%s852 + $0x91] sm:$0xff]
    %v969 = vld [vmem:[%s852 + $0xa9] sm:$0xff]
    %v970 = vld [vmem:[%s852 + $0xb1] sm:$0xff]
    %v971 = vld [vmem:[%s852 + $0xc9] sm:$0xff]
    %v972 = vld [vmem:[%s852 + $0xd1] sm:$0xff]
    %v973 = vld [vmem:[%s852 + $0xe9] sm:$0xff]
    %v974 = vld [vmem:[%s852 + $0xf1] sm:$0xff]
    %v975 = vld [vmem:[#allocation3 + $0x5] sm:$0x1]
    %v976 = vlaneseq
    %v977 = vshrl.u32 %v976, 7
    %v978 = vsub.s32 0, %v977
    %v979 = vrot.slane %v975, %v978
    %v980 = vmul.f32 %v959, %v979
    %v981 = vmul.f32 %v960, %v979
    %v982 = vmul.f32 %v961, %v979
    %v983 = vmul.f32 %v962, %v979
    %v984 = vmul.f32 %v963, %v979
    %v985 = vmul.f32 %v964, %v979
    %v986 = vmul.f32 %v965, %v979
    %v987 = vmul.f32 %v966, %v979
    %v988 = vmul.f32 %v967, %v979
    %v989 = vmul.f32 %v968, %v979
    %v990 = vmul.f32 %v969, %v979
    %v991 = vmul.f32 %v970, %v979
    %v992 = vmul.f32 %v971, %v979
    %v993 = vmul.f32 %v972, %v979
    %v994 = vmul.f32 %v973, %v979
    %v995 = vmul.f32 %v974, %v979
    %v996 = vadd.f32 %v943, %v980
    %v997 = vadd.f32 %v944, %v981
    %v998 = vadd.f32 %v945, %v982
    %v999 = vadd.f32 %v946, %v983
    %v1000 = vadd.f32 %v947, %v984
    %v1001 = vadd.f32 %v948, %v985
    %v1002 = vadd.f32 %v949, %v986
    %v1003 = vadd.f32 %v950, %v987
    %v1004 = vadd.f32 %v951, %v988
    %v1005 = vadd.f32 %v952, %v989
    %v1006 = vadd.f32 %v953, %v990
    %v1007 = vadd.f32 %v954, %v991
    %v1008 = vadd.f32 %v955, %v992
    %v1009 = vadd.f32 %v956, %v993
    %v1010 = vadd.f32 %v957, %v994
    %v1011 = vadd.f32 %v958, %v995
    %s1012 = scalar_lea.vmem [#allocation2], 320
    %v1013 = vld [vmem:[%s1012 + $0x7] sm:$0xff]
    %v1014 = vld [vmem:[%s1012 + $0xf] sm:$0xff]
    %v1015 = vld [vmem:[%s1012 + $0x27] sm:$0xff]
    %v1016 = vld [vmem:[%s1012 + $0x2f] sm:$0xff]
    %v1017 = vld [vmem:[%s1012 + $0x47] sm:$0xff]
    %v1018 = vld [vmem:[%s1012 + $0x4f] sm:$0xff]
    %v1019 = vld [vmem:[%s1012 + $0x67] sm:$0xff]
    %v1020 = vld [vmem:[%s1012 + $0x6f] sm:$0xff]
    %v1021 = vld [vmem:[%s1012 + $0x87] sm:$0xff]
    %v1022 = vld [vmem:[%s1012 + $0x8f] sm:$0xff]
    %v1023 = vld [vmem:[%s1012 + $0xa7] sm:$0xff]
    %v1024 = vld [vmem:[%s1012 + $0xaf] sm:$0xff]
    %v1025 = vld [vmem:[%s1012 + $0xc7] sm:$0xff]
    %v1026 = vld [vmem:[%s1012 + $0xcf] sm:$0xff]
    %v1027 = vld [vmem:[%s1012 + $0xe7] sm:$0xff]
    %v1028 = vld [vmem:[%s1012 + $0xef] sm:$0xff]
    %v1029 = vld [vmem:[#allocation3 + $0x6] sm:$0x1]
    %v1030 = vlaneseq
    %v1031 = vshrl.u32 %v1030, 7
    %v1032 = vsub.s32 0, %v1031
    %v1033 = vrot.slane %v1029, %v1032
    %v1034 = vmul.f32 %v1013, %v1033
    %v1035 = vmul.f32 %v1014, %v1033
    %v1036 = vmul.f32 %v1015, %v1033
    %v1037 = vmul.f32 %v1016, %v1033
    %v1038 = vmul.f32 %v1017, %v1033
    %v1039 = vmul.f32 %v1018, %v1033
    %v1040 = vmul.f32 %v1019, %v1033
    %v1041 = vmul.f32 %v1020, %v1033
    %v1042 = vmul.f32 %v1021, %v1033
    %v1043 = vmul.f32 %v1022, %v1033
    %v1044 = vmul.f32 %v1023, %v1033
    %v1045 = vmul.f32 %v1024, %v1033
    %v1046 = vmul.f32 %v1025, %v1033
    %v1047 = vmul.f32 %v1026, %v1033
    %v1048 = vmul.f32 %v1027, %v1033
    %v1049 = vmul.f32 %v1028, %v1033
    %v1050 = vadd.f32 %v996, %v1034
    %v1051 = vadd.f32 %v997, %v1035
    %v1052 = vadd.f32 %v998, %v1036
    %v1053 = vadd.f32 %v999, %v1037
    %v1054 = vadd.f32 %v1000, %v1038
    %v1055 = vadd.f32 %v1001, %v1039
    %v1056 = vadd.f32 %v1002, %v1040
    %v1057 = vadd.f32 %v1003, %v1041
    %v1058 = vadd.f32 %v1004, %v1042
    %v1059 = vadd.f32 %v1005, %v1043
    %v1060 = vadd.f32 %v1006, %v1044
    %v1061 = vadd.f32 %v1007, %v1045
    %v1062 = vadd.f32 %v1008, %v1046
    %v1063 = vadd.f32 %v1009, %v1047
    %v1064 = vadd.f32 %v1010, %v1048
    %v1065 = vadd.f32 %v1011, %v1049
    %v1066 = vld [vmem:[%s1012 + $0x8] sm:$0xff]
    %v1067 = vld [vmem:[%s1012 + $0x10] sm:$0xff]
    %v1068 = vld [vmem:[%s1012 + $0x28] sm:$0xff]
    %v1069 = vld [vmem:[%s1012 + $0x30] sm:$0xff]
    %v1070 = vld [vmem:[%s1012 + $0x48] sm:$0xff]
    %v1071 = vld [vmem:[%s1012 + $0x50] sm:$0xff]
    %v1072 = vld [vmem:[%s1012 + $0x68] sm:$0xff]
    %v1073 = vld [vmem:[%s1012 + $0x70] sm:$0xff]
    %v1074 = vld [vmem:[%s1012 + $0x88] sm:$0xff]
    %v1075 = vld [vmem:[%s1012 + $0x90] sm:$0xff]
    %v1076 = vld [vmem:[%s1012 + $0xa8] sm:$0xff]
    %v1077 = vld [vmem:[%s1012 + $0xb0] sm:$0xff]
    %v1078 = vld [vmem:[%s1012 + $0xc8] sm:$0xff]
    %v1079 = vld [vmem:[%s1012 + $0xd0] sm:$0xff]
    %v1080 = vld [vmem:[%s1012 + $0xe8] sm:$0xff]
    %v1081 = vld [vmem:[%s1012 + $0xf0] sm:$0xff]
    %v1082 = vld [vmem:[#allocation3 + $0x7] sm:$0x1]
    %v1083 = vlaneseq
    %v1084 = vshrl.u32 %v1083, 7
    %v1085 = vsub.s32 0, %v1084
    %v1086 = vrot.slane %v1082, %v1085
    %v1087 = vmul.f32 %v1066, %v1086
    %v1088 = vmul.f32 %v1067, %v1086
    %v1089 = vmul.f32 %v1068, %v1086
    %v1090 = vmul.f32 %v1069, %v1086
    %v1091 = vmul.f32 %v1070, %v1086
    %v1092 = vmul.f32 %v1071, %v1086
    %v1093 = vmul.f32 %v1072, %v1086
    %v1094 = vmul.f32 %v1073, %v1086
    %v1095 = vmul.f32 %v1074, %v1086
    %v1096 = vmul.f32 %v1075, %v1086
    %v1097 = vmul.f32 %v1076, %v1086
    %v1098 = vmul.f32 %v1077, %v1086
    %v1099 = vmul.f32 %v1078, %v1086
    %v1100 = vmul.f32 %v1079, %v1086
    %v1101 = vmul.f32 %v1080, %v1086
    %v1102 = vmul.f32 %v1081, %v1086
    %v1103 = vadd.f32 %v1050, %v1087
    %v1104 = vadd.f32 %v1051, %v1088
    %v1105 = vadd.f32 %v1052, %v1089
    %v1106 = vadd.f32 %v1053, %v1090
    %v1107 = vadd.f32 %v1054, %v1091
    %v1108 = vadd.f32 %v1055, %v1092
    %v1109 = vadd.f32 %v1056, %v1093
    %v1110 = vadd.f32 %v1057, %v1094
    %v1111 = vadd.f32 %v1058, %v1095
    %v1112 = vadd.f32 %v1059, %v1096
    %v1113 = vadd.f32 %v1060, %v1097
    %v1114 = vadd.f32 %v1061, %v1098
    %v1115 = vadd.f32 %v1062, %v1099
    %v1116 = vadd.f32 %v1063, %v1100
    %v1117 = vadd.f32 %v1064, %v1101
    %v1118 = vadd.f32 %v1065, %v1102
    %v1119 = vld [vmem:[%s1012 + $0x9] sm:$0xff]
    %v1120 = vld [vmem:[%s1012 + $0x11] sm:$0xff]
    %v1121 = vld [vmem:[%s1012 + $0x29] sm:$0xff]
    %v1122 = vld [vmem:[%s1012 + $0x31] sm:$0xff]
    %v1123 = vld [vmem:[%s1012 + $0x49] sm:$0xff]
    %v1124 = vld [vmem:[%s1012 + $0x51] sm:$0xff]
    %v1125 = vld [vmem:[%s1012 + $0x69] sm:$0xff]
    %v1126 = vld [vmem:[%s1012 + $0x71] sm:$0xff]
    %v1127 = vld [vmem:[%s1012 + $0x89] sm:$0xff]
    %v1128 = vld [vmem:[%s1012 + $0x91] sm:$0xff]
    %v1129 = vld [vmem:[%s1012 + $0xa9] sm:$0xff]
    %v1130 = vld [vmem:[%s1012 + $0xb1] sm:$0xff]
    %v1131 = vld [vmem:[%s1012 + $0xc9] sm:$0xff]
    %v1132 = vld [vmem:[%s1012 + $0xd1] sm:$0xff]
    %v1133 = vld [vmem:[%s1012 + $0xe9] sm:$0xff]
    %v1134 = vld [vmem:[%s1012 + $0xf1] sm:$0xff]
    %v1135 = vld [vmem:[#allocation3 + $0x8] sm:$0x1]
    %v1136 = vlaneseq
    %v1137 = vshrl.u32 %v1136, 7
    %v1138 = vsub.s32 0, %v1137
    %v1139 = vrot.slane %v1135, %v1138
    %v1140 = vmul.f32 %v1119, %v1139
    %v1141 = vmul.f32 %v1120, %v1139
    %v1142 = vmul.f32 %v1121, %v1139
    %v1143 = vmul.f32 %v1122, %v1139
    %v1144 = vmul.f32 %v1123, %v1139
    %v1145 = vmul.f32 %v1124, %v1139
    %v1146 = vmul.f32 %v1125, %v1139
    %v1147 = vmul.f32 %v1126, %v1139
    %v1148 = vmul.f32 %v1127, %v1139
    %v1149 = vmul.f32 %v1128, %v1139
    %v1150 = vmul.f32 %v1129, %v1139
    %v1151 = vmul.f32 %v1130, %v1139
    %v1152 = vmul.f32 %v1131, %v1139
    %v1153 = vmul.f32 %v1132, %v1139
    %v1154 = vmul.f32 %v1133, %v1139
    %v1155 = vmul.f32 %v1134, %v1139
    %v1156 = vadd.f32 %v1103, %v1140
    %v1157 = vadd.f32 %v1104, %v1141
    %v1158 = vadd.f32 %v1105, %v1142
    %v1159 = vadd.f32 %v1106, %v1143
    %v1160 = vadd.f32 %v1107, %v1144
    %v1161 = vadd.f32 %v1108, %v1145
    %v1162 = vadd.f32 %v1109, %v1146
    %v1163 = vadd.f32 %v1110, %v1147
    %v1164 = vadd.f32 %v1111, %v1148
    %v1165 = vadd.f32 %v1112, %v1149
    %v1166 = vadd.f32 %v1113, %v1150
    %v1167 = vadd.f32 %v1114, %v1151
    %v1168 = vadd.f32 %v1115, %v1152
    %v1169 = vadd.f32 %v1116, %v1153
    %v1170 = vadd.f32 %v1117, %v1154
    %v1171 = vadd.f32 %v1118, %v1155
    %s1172 = scalar_lea.vmem [#allocation8], 128
    %1173 = vst [vmem:[%s1172] sm:$0xff] %v1156
    %1174 = vst [vmem:[%s1172 + $0x8] sm:$0xff] %v1157
    %1175 = vst [vmem:[%s1172 + $0x10] sm:$0xff] %v1158
    %1176 = vst [vmem:[%s1172 + $0x18] sm:$0xff] %v1159
    %1177 = vst [vmem:[%s1172 + $0x20] sm:$0xff] %v1160
    %1178 = vst [vmem:[%s1172 + $0x28] sm:$0xff] %v1161
    %1179 = vst [vmem:[%s1172 + $0x30] sm:$0xff] %v1162
    %1180 = vst [vmem:[%s1172 + $0x38] sm:$0xff] %v1163
    %1181 = vst [vmem:[%s1172 + $0x40] sm:$0xff] %v1164
    %1182 = vst [vmem:[%s1172 + $0x48] sm:$0xff] %v1165
    %1183 = vst [vmem:[%s1172 + $0x50] sm:$0xff] %v1166
    %1184 = vst [vmem:[%s1172 + $0x58] sm:$0xff] %v1167
    %1185 = vst [vmem:[%s1172 + $0x60] sm:$0xff] %v1168
    %1186 = vst [vmem:[%s1172 + $0x68] sm:$0xff] %v1169
    %1187 = vst [vmem:[%s1172 + $0x70] sm:$0xff] %v1170
    %1188 = vst [vmem:[%s1172 + $0x78] sm:$0xff] %v1171
    // Predicated region
    $region22: #{tpu_custom_call.1} parent=1 // pred_check
      _
    $region23: #{tpu_custom_call.1} parent=1 // pred_check_branch
      %1190 = sbr.rel (0) target = $region25
    $region24: #{tpu_custom_call.1} parent=1 // pred_region
      %s1192 = ssub.s32 4096, 4096
      %1193 = vsyncadd [#allocation5], %s1192
      %s1194 = sshll.u32 [#allocation8], 4
      %s1195 = int_to_ptr.vmem [resolvable:$true] %s1194
      %1200 = dma.vmem_to_hbm [thread:$0]  %s1195, 4096, %s3, [#allocation5], 128, 128, 8
    $region25: #{tpu_custom_call.1} parent=1 // pred_fallthru
      _
    // Predicated region
    $region26: #{tpu_custom_call.1} parent=1 // pred_check
      _
    $region27: #{tpu_custom_call.1} parent=1 // pred_check_branch
      %1202 = sbr.rel (0) target = $region29
    $region28: #{tpu_custom_call.1} parent=1 // pred_region
      %1203 = dma.done [#allocation5], 4096
    $region29: #{tpu_custom_call.1} parent=1 // pred_fallthru
      _
    %1204 = vsyncpa [#allocation4], 1
    %1205 = vsyncpa [#allocation7], 1
    %1206 = vsyncpa [#allocation5], 1

</llo_original>
